<compile_context>
chip_gen: v6e
topology: v6e:2x2x1
jax: 0.10.0
libtpu: 0.0.40
codegen_flags: <defaults>
</compile_context>

<pallas_src>
import jax
import jax.numpy as jnp
from jax import lax
from jax.experimental import pallas as pl
from jax.experimental.pallas import tpu as pltpu


def _pam_kernel(x_cn_ref, x_tok_ref, wq_t_ref, bq_ref, wkv_ref, bkv_ref,
                gamma_ref, o_ref, q_s, k_s, v_s, e_s):
    qt = pl.program_id(1)              # query-tile index (innermost grid axis)
    _, tq = o_ref.shape                # (C, TQ)
    cq = q_s.shape[1]                  # C // 8

    # Once per batch element: projections, cached in VMEM scratch for all q tiles.
    @pl.when(qt == 0)
    def _():
        # q in token layout (N, Cq): standard NN matmul on the MXU.
        q_s[...] = (jnp.dot(x_tok_ref[...], wq_t_ref[...],
                            preferred_element_type=jnp.float32) + bq_ref[...])
        # Fused k/v projection, channel-major: (Cq + C, C) @ (C, N).
        kv = (jnp.dot(wkv_ref[...], x_cn_ref[...],
                      preferred_element_type=jnp.float32) + bkv_ref[...])
        k_s[...] = kv[:cq, :]          # (Cq, N)
        v_s[...] = kv[cq:, :]          # (C,  N)

    col0 = pl.multiple_of(qt * tq, tq)
    q = q_s[pl.ds(col0, tq), :]        # (TQ, Cq) queries of this tile

    # energy[i, j] = <q_i, k_j>  -> (TQ, N)
    if cq <= 8:
        # Tiny contraction: rank-Cq broadcast outer product on the VPU.
        e = q[:, 0:1] * k_s[0:1, :]
        for c in range(1, cq):
            e = e + q[:, c:c + 1] * k_s[c:c + 1, :]
        e_s[...] = e
    else:
        e_s[...] = jnp.dot(q, k_s[...], preferred_element_type=jnp.float32)

    # Numerically-stable softmax over keys (lane axis), in place in e_s.
    m = jnp.max(e_s[...], axis=-1, keepdims=True)
    e_s[...] = jnp.exp(e_s[...] - m)
    denom = jnp.sum(e_s[...], axis=-1, keepdims=True)
    e_s[...] = e_s[...] * pl.reciprocal(denom, approx=True)

    # out[c, i] = sum_j v[c, j] * attn[i, j]  == v @ attn^T  -> lane-dense (C, TQ).
    out = lax.dot_general(v_s[...], e_s[...], (((1,), (1,)), ((), ())),
                          preferred_element_type=jnp.float32)

    gamma = gamma_ref[0]
    o_ref[...] = gamma * out + x_cn_ref[:, pl.ds(col0, tq)]


def pam_module_forward(x, wq, bq, wk, bk, wv, bv, gamma, *, tq=None):
    """x: (B, C, H, W, 1) f32.  Conv 1x1 weights in PyTorch (out, in) layout."""
    x = jnp.squeeze(x, axis=-1)
    B, C, H, W = x.shape
    N = H * W
    Cq = wq.shape[0]

    x_cn = x.reshape(B, C, N)                      # channel-major (free reshape)
    x_tok = jnp.transpose(x_cn, (0, 2, 1))         # token-major, only for q projection
    # TODO(synk): x_tok could be derived in-kernel via a transposed-lhs dot_general;
    # kept as one small wrapper transpose so all in-kernel matmuls use the standard
    # NN/NT MXU forms (the old output-side transpose is gone entirely).

    if tq is None:
        tq = next((t for t in (512, 256, 128) if N % t == 0), N)
    nq = N // tq

    wq_t = wq.T                                    # (C, Cq)
    bq2 = bq.reshape(1, Cq)
    wkv = jnp.concatenate([wk, wv], axis=0)        # (Cq + C, C) fused k/v weights
    bkv = jnp.concatenate([bk, bv], axis=0).reshape(Cq + C, 1)
    gamma1 = gamma.reshape(1)

    out_cn = pl.pallas_call(
        _pam_kernel,
        out_shape=jax.ShapeDtypeStruct((B, C, N), jnp.float32),
        grid_spec=pltpu.PrefetchScalarGridSpec(
            num_scalar_prefetch=0,
            grid=(B, nq),
            in_specs=[
                pl.BlockSpec((None, C, N), lambda b, q: (b, 0, 0)),   # x channel-major
                pl.BlockSpec((None, N, C), lambda b, q: (b, 0, 0)),   # x token-major
                pl.BlockSpec((C, Cq), lambda b, q: (0, 0)),           # Wq^T
                pl.BlockSpec((1, Cq), lambda b, q: (0, 0)),           # bq
                pl.BlockSpec((Cq + C, C), lambda b, q: (0, 0)),       # [Wk; Wv]
                pl.BlockSpec((Cq + C, 1), lambda b, q: (0, 0)),       # [bk; bv]
                pl.BlockSpec(memory_space=pltpu.MemorySpace.SMEM),    # gamma (scalar)
            ],
            out_specs=pl.BlockSpec((None, C, tq), lambda b, q: (b, 0, q)),
            scratch_shapes=[
                pltpu.VMEM((N, Cq), jnp.float32),   # q cache (token layout)
                pltpu.VMEM((Cq, N), jnp.float32),   # k cache (channel-major)
                pltpu.VMEM((C, N), jnp.float32),    # v cache (channel-major)
                pltpu.VMEM((tq, N), jnp.float32),   # energy/attn (in-place softmax)
            ],
        ),
        compiler_params=pltpu.CompilerParams(
            dimension_semantics=("parallel", "arbitrary")),
    )(x_cn, x_tok, wq_t, bq2, wkv, bkv, gamma1)

    return out_cn.reshape(B, C, H, W)[..., None]


def _reference_forward(x, wq, bq, wk, bk, wv, bv, gamma):
    """Pure-JAX reference matching the PyTorch forward."""
    x = jnp.squeeze(x, axis=-1)
    B, C, H, W = x.shape
    N = H * W
    x_cn = x.reshape(B, C, N)
    q = jnp.einsum('oc,bcn->bno', wq, x_cn) + bq                 # (B, N, Cq)
    k = jnp.einsum('oc,bcn->bon', wk, x_cn) + bk[:, None]        # (B, Cq, N)
    v = jnp.einsum('oc,bcn->bon', wv, x_cn) + bv[:, None]        # (B, C, N)
    energy = jnp.einsum('bnd,bdm->bnm', q, k)                    # (B, N, N)
    attn = jax.nn.softmax(energy, axis=-1)
    out = jnp.einsum('bcj,bij->bci', v, attn)                    # == bmm(v, attn^T)
    out = out.reshape(B, C, H, W)
    out = gamma.reshape(()) * out + x
    return out[..., None]


if __name__ == "__main__":
    key = jax.random.PRNGKey(0)
    B, C, H, W = 2, 8, 16, 16          # in_dim=8 -> query/key channels = in_dim // 8 = 1
    Cq = C // 8

    k0, k1, k2, k3, k4, k5, k6 = jax.random.split(key, 7)
    x = jax.random.normal(k0, (B, C, H, W, 1), dtype=jnp.float32)

    # Conv2d 1x1 weights in PyTorch (out_channels, in_channels) layout.
    wq = jax.random.normal(k1, (Cq, C), dtype=jnp.float32) * 0.1
    bq = jax.random.normal(k2, (Cq,),  dtype=jnp.float32) * 0.1
    wk = jax.random.normal(k3, (Cq, C), dtype=jnp.float32) * 0.1
    bk = jax.random.normal(k4, (Cq,),  dtype=jnp.float32) * 0.1
    wv = jax.random.normal(k5, (C, C), dtype=jnp.float32) * 0.1
    bv = jax.random.normal(k6, (C,),   dtype=jnp.float32) * 0.1
    # PyTorch inits gamma to zeros; use a nonzero value here so the attention
    # path is actually exercised (set to 0.0 to match torch's init exactly).
    gamma = jnp.array([0.5], dtype=jnp.float32)

    out = pam_module_forward(x, wq, bq, wk, bk, wv, bv, gamma)
    out = jax.block_until_ready(out)

    ref = _reference_forward(x, wq, bq, wk, bk, wv, bv, gamma)
    assert out.shape == (B, C, H, W, 1)
    # Tolerance covers the EUP approximate reciprocal in the softmax row
    # normalization and f32 accumulation-order differences.
    assert jnp.allclose(out, ref, atol=2e-3, rtol=2e-3), "mismatch vs reference"

    print("KERNEL_OK")
</pallas_src>

<mosaic_0001>
module attributes {stable_mosaic.version = 11 : i64} {
  func.func @_pam_kernel(%arg0: i32, %arg1: i32, %arg2: memref<1x8x256xf32, #tpu.memory_space<vmem>>, %arg3: memref<1x256x8xf32, #tpu.memory_space<vmem>>, %arg4: memref<8x1xf32, #tpu.memory_space<vmem>>, %arg5: memref<1x1xf32, #tpu.memory_space<vmem>>, %arg6: memref<9x8xf32, #tpu.memory_space<vmem>>, %arg7: memref<9x1xf32, #tpu.memory_space<vmem>>, %arg8: memref<1xf32, #tpu.memory_space<smem>>, %arg9: memref<1x8x256xf32, #tpu.memory_space<vmem>>, %arg10: memref<256x1xf32, #tpu.memory_space<vmem>>, %arg11: memref<1x256xf32, #tpu.memory_space<vmem>>, %arg12: memref<8x256xf32, #tpu.memory_space<vmem>>, %arg13: memref<256x256xf32, #tpu.memory_space<vmem>>) attributes {dimension_semantics = [#tpu.dimension_semantics<parallel>, #tpu.dimension_semantics<arbitrary>], iteration_bounds = array<i64: 2, 1>, scalar_prefetch = 0 : i64, scratch_operands = 4 : i64, tpu.core_type = #tpu.core_type<tc>, window_params = [{transform_indices = @transform_0, window_bounds = array<i64: 1, 8, 256>}, {transform_indices = @transform_1, window_bounds = array<i64: 1, 256, 8>}, {pipeline_mode = #tpu.pipeline_mode<synchronous>, transform_indices = @transform_2, window_bounds = array<i64: 8, 1>}, {pipeline_mode = #tpu.pipeline_mode<synchronous>, transform_indices = @transform_3, window_bounds = array<i64: 1, 1>}, {pipeline_mode = #tpu.pipeline_mode<synchronous>, transform_indices = @transform_4, window_bounds = array<i64: 9, 8>}, {pipeline_mode = #tpu.pipeline_mode<synchronous>, transform_indices = @transform_5, window_bounds = array<i64: 9, 1>}, {transform_indices = @transform_6, window_bounds = array<i64: 1>}, {transform_indices = @transform_7, window_bounds = array<i64: 1, 8, 256>}]} {
    %c0_i32 = arith.constant 0 : i32
    %0 = arith.cmpi eq, %arg1, %c0_i32 : i32
    %1 = arith.extui %0 : i1 to i32
    %c0_i32_0 = arith.constant 0 : i32
    %2 = arith.cmpi ne, %1, %c0_i32_0 : i32
    scf.if %2 {
      %c0_29 = arith.constant 0 : index
      %c0_30 = arith.constant 0 : index
      %c0_31 = arith.constant 0 : index
      %41 = vector.load %arg3[%c0_29, %c0_30, %c0_31] : memref<1x256x8xf32, #tpu.memory_space<vmem>>, vector<1x256x8xf32>
      %42 = vector.shape_cast %41 : vector<1x256x8xf32> to vector<256x8xf32>
      %c0_32 = arith.constant 0 : index
      %c0_33 = arith.constant 0 : index
      %43 = vector.load %arg4[%c0_32, %c0_33] : memref<8x1xf32, #tpu.memory_space<vmem>>, vector<8x1xf32>
      %cst_34 = arith.constant dense<0.000000e+00> : vector<256x1xf32>
      %44 = tpu.matmul %42, %43, %cst_34 {dimension_numbers = #tpu.dot_dimension_numbers<[1], [0], [0], [1], [0, 0, 1, 1], [], []>} : vector<256x8xf32>, vector<8x1xf32>, vector<256x1xf32> -> vector<256x1xf32>
      %c0_35 = arith.constant 0 : index
      %c0_36 = arith.constant 0 : index
      %45 = vector.load %arg5[%c0_35, %c0_36] : memref<1x1xf32, #tpu.memory_space<vmem>>, vector<1x1xf32>
      %46 = vector.broadcast %45 : vector<1x1xf32> to vector<256x1xf32>
      %47 = arith.addf %44, %46 : vector<256x1xf32>
      %c0_37 = arith.constant 0 : index
      %c0_38 = arith.constant 0 : index
      %48 = vector.load %arg10[%c0_37, %c0_38] : memref<256x1xf32, #tpu.memory_space<vmem>>, vector<256x1xf32>
      tpu.vector_store %arg10[%c0_37, %c0_38], %47 {strides = array<i32>} : memref<256x1xf32, #tpu.memory_space<vmem>>, vector<256x1xf32>,
      %c0_39 = arith.constant 0 : index
      %c0_40 = arith.constant 0 : index
      %49 = vector.load %arg6[%c0_39, %c0_40] : memref<9x8xf32, #tpu.memory_space<vmem>>, vector<9x8xf32>
      %c0_41 = arith.constant 0 : index
      %c0_42 = arith.constant 0 : index
      %c0_43 = arith.constant 0 : index
      %50 = vector.load %arg2[%c0_41, %c0_42, %c0_43] : memref<1x8x256xf32, #tpu.memory_space<vmem>>, vector<1x8x256xf32>
      %51 = vector.shape_cast %50 : vector<1x8x256xf32> to vector<8x256xf32>
      %cst_44 = arith.constant dense<0.000000e+00> : vector<9x256xf32>
      %52 = tpu.matmul %49, %51, %cst_44 {dimension_numbers = #tpu.dot_dimension_numbers<[1], [0], [0], [1], [0, 0, 1, 1], [], []>} : vector<9x8xf32>, vector<8x256xf32>, vector<9x256xf32> -> vector<9x256xf32>
      %c0_45 = arith.constant 0 : index
      %c0_46 = arith.constant 0 : index
      %53 = vector.load %arg7[%c0_45, %c0_46] : memref<9x1xf32, #tpu.memory_space<vmem>>, vector<9x1xf32>
      %54 = vector.broadcast %53 : vector<9x1xf32> to vector<9x256xf32>
      %55 = arith.addf %52, %54 : vector<9x256xf32>
      %56 = vector.extract_strided_slice %55 {offsets = [0, 0], sizes = [1, 256], strides = [1, 1]} : vector<9x256xf32> to vector<1x256xf32>
      %c0_47 = arith.constant 0 : index
      %c0_48 = arith.constant 0 : index
      %57 = vector.load %arg11[%c0_47, %c0_48] : memref<1x256xf32, #tpu.memory_space<vmem>>, vector<1x256xf32>
      tpu.vector_store %arg11[%c0_47, %c0_48], %56 {strides = array<i32>} : memref<1x256xf32, #tpu.memory_space<vmem>>, vector<1x256xf32>,
      %58 = vector.extract_strided_slice %55 {offsets = [1, 0], sizes = [8, 256], strides = [1, 1]} : vector<9x256xf32> to vector<8x256xf32>
      %c0_49 = arith.constant 0 : index
      %c0_50 = arith.constant 0 : index
      %59 = vector.load %arg12[%c0_49, %c0_50] : memref<8x256xf32, #tpu.memory_space<vmem>>, vector<8x256xf32>
      tpu.vector_store %arg12[%c0_49, %c0_50], %58 {strides = array<i32>} : memref<8x256xf32, #tpu.memory_space<vmem>>, vector<8x256xf32>,
    } else {
    }
    %c256_i32 = arith.constant 256 : i32
    %3 = arith.muli %arg1, %c256_i32 : i32
    %4 = tpu.assume_multiple %3, 256 : i32
    %5 = arith.index_cast %4 : i32 to index
    %c0 = arith.constant 0 : index
    %6 = vector.load %arg10[%5, %c0] : memref<256x1xf32, #tpu.memory_space<vmem>>, vector<256x1xf32>
    %c0_1 = arith.constant 0 : index
    %c0_2 = arith.constant 0 : index
    %7 = vector.load %arg11[%c0_1, %c0_2] : memref<1x256xf32, #tpu.memory_space<vmem>>, vector<1x256xf32>
    %8 = vector.broadcast %6 : vector<256x1xf32> to vector<256x256xf32>
    %9 = vector.broadcast %7 : vector<1x256xf32> to vector<256x256xf32>
    %10 = arith.mulf %8, %9 : vector<256x256xf32>
    %c0_3 = arith.constant 0 : index
    %c0_4 = arith.constant 0 : index
    %11 = vector.load %arg13[%c0_3, %c0_4] : memref<256x256xf32, #tpu.memory_space<vmem>>, vector<256x256xf32>
    tpu.vector_store %arg13[%c0_3, %c0_4], %10 {strides = array<i32>} : memref<256x256xf32, #tpu.memory_space<vmem>>, vector<256x256xf32>,
    %c0_5 = arith.constant 0 : index
    %c0_6 = arith.constant 0 : index
    %12 = vector.load %arg13[%c0_5, %c0_6] : memref<256x256xf32, #tpu.memory_space<vmem>>, vector<256x256xf32>
    %cst = arith.constant dense<0xFF800000> : vector<256xf32>
    %13 = vector.multi_reduction <maximumf>, %12, %cst [1] : vector<256x256xf32> to vector<256xf32>
    %14 = vector.shape_cast %13 : vector<256xf32> to vector<256x1xf32>
    %c0_7 = arith.constant 0 : index
    %c0_8 = arith.constant 0 : index
    %15 = vector.load %arg13[%c0_7, %c0_8] : memref<256x256xf32, #tpu.memory_space<vmem>>, vector<256x256xf32>
    %16 = vector.broadcast %14 : vector<256x1xf32> to vector<256x256xf32>
    %17 = arith.subf %15, %16 : vector<256x256xf32>
    %18 = math.exp %17 : vector<256x256xf32>
    %c0_9 = arith.constant 0 : index
    %c0_10 = arith.constant 0 : index
    %19 = vector.load %arg13[%c0_9, %c0_10] : memref<256x256xf32, #tpu.memory_space<vmem>>, vector<256x256xf32>
    tpu.vector_store %arg13[%c0_9, %c0_10], %18 {strides = array<i32>} : memref<256x256xf32, #tpu.memory_space<vmem>>, vector<256x256xf32>,
    %c0_11 = arith.constant 0 : index
    %c0_12 = arith.constant 0 : index
    %20 = vector.load %arg13[%c0_11, %c0_12] : memref<256x256xf32, #tpu.memory_space<vmem>>, vector<256x256xf32>
    %cst_13 = arith.constant dense<0.000000e+00> : vector<256xf32>
    %21 = vector.multi_reduction <add>, %20, %cst_13 [1] : vector<256x256xf32> to vector<256xf32>
    %22 = vector.shape_cast %21 : vector<256xf32> to vector<256x1xf32>
    %c0_14 = arith.constant 0 : index
    %c0_15 = arith.constant 0 : index
    %23 = vector.load %arg13[%c0_14, %c0_15] : memref<256x256xf32, #tpu.memory_space<vmem>>, vector<256x256xf32>
    %24 = tpu.reciprocal %22 {approx = true} : vector<256x1xf32> -> vector<256x1xf32>
    %25 = vector.broadcast %24 : vector<256x1xf32> to vector<256x256xf32>
    %26 = arith.mulf %23, %25 : vector<256x256xf32>
    %c0_16 = arith.constant 0 : index
    %c0_17 = arith.constant 0 : index
    %27 = vector.load %arg13[%c0_16, %c0_17] : memref<256x256xf32, #tpu.memory_space<vmem>>, vector<256x256xf32>
    tpu.vector_store %arg13[%c0_16, %c0_17], %26 {strides = array<i32>} : memref<256x256xf32, #tpu.memory_space<vmem>>, vector<256x256xf32>,
    %c0_18 = arith.constant 0 : index
    %c0_19 = arith.constant 0 : index
    %28 = vector.load %arg12[%c0_18, %c0_19] : memref<8x256xf32, #tpu.memory_space<vmem>>, vector<8x256xf32>
    %c0_20 = arith.constant 0 : index
    %c0_21 = arith.constant 0 : index
    %29 = vector.load %arg13[%c0_20, %c0_21] : memref<256x256xf32, #tpu.memory_space<vmem>>, vector<256x256xf32>
    %cst_22 = arith.constant dense<0.000000e+00> : vector<8x256xf32>
    %30 = tpu.matmul %28, %29, %cst_22 {dimension_numbers = #tpu.dot_dimension_numbers<[1], [1], [0], [0], [0, 0, 1, 0], [], []>} : vector<8x256xf32>, vector<256x256xf32>, vector<8x256xf32> -> vector<8x256xf32>
    %c0_23 = arith.constant 0 : index
    %31 = memref.load %arg8[%c0_23] : memref<1xf32, #tpu.memory_space<smem>>
    %32 = vector.broadcast %31 : f32 to vector<8x256xf32>
    %33 = arith.mulf %32, %30 : vector<8x256xf32>
    %c0_24 = arith.constant 0 : index
    %c0_25 = arith.constant 0 : index
    %34 = arith.index_cast %4 : i32 to index
    %35 = vector.load %arg2[%c0_24, %c0_25, %34] : memref<1x8x256xf32, #tpu.memory_space<vmem>>, vector<1x8x256xf32>
    %36 = vector.shape_cast %35 : vector<1x8x256xf32> to vector<8x256xf32>
    %37 = arith.addf %33, %36 : vector<8x256xf32>
    %c0_26 = arith.constant 0 : index
    %c0_27 = arith.constant 0 : index
    %c0_28 = arith.constant 0 : index
    %38 = vector.load %arg9[%c0_26, %c0_27, %c0_28] : memref<1x8x256xf32, #tpu.memory_space<vmem>>, vector<1x8x256xf32>
    %39 = vector.shape_cast %38 : vector<1x8x256xf32> to vector<8x256xf32>
    %40 = vector.shape_cast %37 : vector<8x256xf32> to vector<1x8x256xf32>
    tpu.vector_store %arg9[%c0_26, %c0_27, %c0_28], %40 {strides = array<i32>} : memref<1x8x256xf32, #tpu.memory_space<vmem>>, vector<1x8x256xf32>,
    return
  }
  func.func @transform_0(%arg0: i32, %arg1: i32) -> (i32, i32, i32) {
    %c0_i32 = arith.constant 0 : i32
    %c0_i32_0 = arith.constant 0 : i32
    %c0_i32_1 = arith.constant 0 : i32
    return %arg0, %c0_i32, %c0_i32_0 : i32, i32, i32
  }
  func.func @transform_1(%arg0: i32, %arg1: i32) -> (i32, i32, i32) {
    %c0_i32 = arith.constant 0 : i32
    %c0_i32_0 = arith.constant 0 : i32
    %c0_i32_1 = arith.constant 0 : i32
    return %arg0, %c0_i32, %c0_i32_0 : i32, i32, i32
  }
  func.func @transform_2(%arg0: i32, %arg1: i32) -> (i32, i32) {
    %c0_i32 = arith.constant 0 : i32
    %c0_i32_0 = arith.constant 0 : i32
    %c0_i32_1 = arith.constant 0 : i32
    return %c0_i32, %c0_i32_0 : i32, i32
  }
  func.func @transform_3(%arg0: i32, %arg1: i32) -> (i32, i32) {
    %c0_i32 = arith.constant 0 : i32
    %c0_i32_0 = arith.constant 0 : i32
    %c0_i32_1 = arith.constant 0 : i32
    return %c0_i32, %c0_i32_0 : i32, i32
  }
  func.func @transform_4(%arg0: i32, %arg1: i32) -> (i32, i32) {
    %c0_i32 = arith.constant 0 : i32
    %c0_i32_0 = arith.constant 0 : i32
    %c0_i32_1 = arith.constant 0 : i32
    return %c0_i32, %c0_i32_0 : i32, i32
  }
  func.func @transform_5(%arg0: i32, %arg1: i32) -> (i32, i32) {
    %c0_i32 = arith.constant 0 : i32
    %c0_i32_0 = arith.constant 0 : i32
    %c0_i32_1 = arith.constant 0 : i32
    return %c0_i32, %c0_i32_0 : i32, i32
  }
  func.func @transform_6(%arg0: i32, %arg1: i32) -> i32 {
    %c0_i32 = arith.constant 0 : i32
    %c0_i32_0 = arith.constant 0 : i32
    return %c0_i32 : i32
  }
  func.func @transform_7(%arg0: i32, %arg1: i32) -> (i32, i32, i32) {
    %c0_i32 = arith.constant 0 : i32
    %c0_i32_0 = arith.constant 0 : i32
    return %arg0, %c0_i32, %arg1 : i32, i32, i32
  }
}

</mosaic_0001>

<llo_original>
// kernel: tpu_custom_call.1
$region0: #{tpu_custom_call.1}
  #allocation0 [shape = 'u32[]', space=smem, size = 0x4, offset = 0x4, fixed_abs, tag = 'smem constant byte address 0x4 - core index']
  #allocation1 [shape = 'u32[144,128]{1,0:T(1,128)}', space=vmem, size = 0x12000, scoped, tag = 'internal scratch']
  #allocation2 [shape = 'f32[256,1]{1,0:T(8,128)}', space=vmem, size = 0x20000, scoped, tag = 'scratch operand']
  #allocation3 [shape = 'f32[1,256]{1,0:T(1,128)}', space=vmem, size = 0x400, scoped, tag = 'scratch operand']
  #allocation4 [shape = 'f32[8,256]{1,0:T(8,128)}', space=vmem, size = 0x2000, scoped, tag = 'scratch operand']
  #allocation5 [shape = 'f32[256,256]{1,0:T(8,128)}', space=vmem, size = 0x40000, scoped, tag = 'scratch operand']
  #allocation6 [shape = 'f32[1,1]{1,0:T(1,128)S(1)}', space=vmem, size = 0x200, scoped, tag = 'scoped memory for tpu_custom_call.1']
  #allocation7 [shape = 'f32[1]{0:T(128)S(6)}', space=smem, size = 0x200, scoped, tag = 'scoped memory for tpu_custom_call.1']
  %s0 = inlined_call_operand.vmem [shape: f32[2,8,256], index: 0, kind: input, shape index: {}]
  %s1 = inlined_call_operand.vmem [shape: f32[2,256,8], index: 1, kind: input, shape index: {}]
  %s2 = inlined_call_operand.vmem [shape: f32[8,1], index: 2, kind: input, shape index: {}]
  %s3 = inlined_call_operand.<no memory space> [shape: f32[1,1], index: 3, kind: input, shape index: {}]
  %s4 = inlined_call_operand.vmem [shape: f32[9,8], index: 4, kind: input, shape index: {}]
  %s5 = inlined_call_operand.vmem [shape: f32[9,1], index: 5, kind: input, shape index: {}]
  %s6 = inlined_call_operand.<no memory space> [shape: f32[1], index: 6, kind: input, shape index: {}]
  %s7 = inlined_call_operand.hbm [shape: f32[2,8,256], index: 7, kind: output, shape index: {}]
  %s8 = sld [smem:[#allocation0]]
  $region65: #{tpu_custom_call.1} parent=0
    _
  %s10 = ssub.s32 1, %s8
  %s11 = scalar_select 0, %s10, %s8
  %v12 = vstv %s3
  %13 = vst [vmem:[#allocation6] sm:$0x1] %v12
  %14 = sst [smem:[#allocation7]] %s6
  $region1: #{tpu_custom_call.1} parent=0
    #allocation8 [shape = 'u8[16384]{0}', space=vmem, size = 0x4000, scoped, tag = 'output window, operand 0']
    #allocation9 [shape = 's32[2]{0}', space=sflag, size = 0x8, scoped, tag = 'scoped memory for tpu_custom_call.1']
    %15 = vsyncpa [#allocation9], 0
    %s16 = scalar_lea.sflag [#allocation9], 1
    %17 = vsyncpa %s16, 0
    loop: start=0, step=1, limit=4
    $region2: #{tpu_custom_call.1} parent=1 // loop_pre_header
      _
    $region3: #{tpu_custom_call.1} parent=1 // loop_header
      %s19 = sphi 0, %s23
      %p20 = scmp.ge.s32.totalorder %s19, 4
      %s26 = sphi 0, %s38
      %s27 = sphi 0, %s34
      %s28 = sphi 0, %s26
      %s29 = sphi 0, %s27
      %s30 = sphi 0, %s28
      %s31 = sphi 0, %s29
      %s41 = sphi 0, %s43
      %s44 = sphi 0, %s41
      %s45 = sphi 0, %s44
      %s61 = sphi 0, %s45
      %s67 = sphi 0, %s69
      %s70 = sphi 0, %s67
      %s71 = sphi 0, %s70
      %s87 = sphi 0, %s71
      %s91 = sphi 0, %s91
      %s93 = sphi 0, %s91
      %s94 = sphi 0, %s93
      %s108 = sphi 0, %s94
      %s112 = sphi 0, %s112
      %s114 = sphi 0, %s112
      %s115 = sphi 0, %s114
      %s129 = sphi 0, %s115
      %s133 = sphi 0, %s133
      %s135 = sphi 0, %s133
      %s136 = sphi 0, %s135
      %s150 = sphi 0, %s136
      %s154 = sphi 0, %s154
      %s156 = sphi 0, %s154
      %s157 = sphi 0, %s156
      %s171 = sphi 0, %s157
      %s175 = sphi 0, %s175
      %s177 = sphi 0, %s175
      %s178 = sphi 0, %s177
      %s192 = sphi 0, %s178
      %s200 = sphi 0, %s202
      %s203 = sphi 0, %s200
      %s204 = sphi 0, %s203
      %s220 = sphi 0, %s204
    $region4: #{tpu_custom_call.1} parent=1 // loop_header_branch
      %22 = sbr.rel (%p20) target = $region8
    $region5: #{tpu_custom_call.1} parent=1 // loop_body
      %s24 = ssub.s32 %s19, 1
      %s25 = ssub.s32 %s19, 2
      %s32 = sadd.s32 1, %s27
      %p33 = scmp.ge.s32.totalorder %s32, 1
      %s34 = scalar_select %p33, 0, %s32
      %s35 = sadd.s32 1, %s26
      %s36 = scalar_select %p33, %s35, %s26
      %p37 = scmp.ge.s32.totalorder %s36, 2
      %s38 = scalar_select %p37, 0, %s36
      %s39 = ssub.s32 %s26, %s38
      %p40 = scmp.eq.s32.totalorder %s39, 0
      %s42 = sadd.s32 %s41, 1
      %s43 = scalar_select %p40, %s41, %s42
      %p46 = pneg %p40
      %p47 = scmp.eq.s32.totalorder %s19, 1
      %p48 = por %p46, %p47
      %p49 = scmp.ne.s32.totalorder %s41, %s44
      %p50 = scmp.eq.s32.totalorder %s19, 0
      %p51 = por %p49, %p50
      %p52 = scmp.ne.s32.totalorder %s41, %s44
      %p53 = scmp.eq.s32.totalorder %s24, 1
      %p54 = por %p52, %p53
      %p55 = scmp.ne.s32.totalorder %s44, %s45
      %p56 = scmp.eq.s32.totalorder %s24, 0
      %p57 = por %p55, %p56
      %p58 = scmp.ne.s32.totalorder %s44, %s45
      %p59 = scmp.eq.s32.totalorder %s25, 1
      %p60 = por %p58, %p59
      %p62 = scmp.ne.s32.totalorder %s45, %s61
      %p63 = scmp.eq.s32.totalorder %s25, 0
      %p64 = por %p62, %p63
      %s65 = ssub.s32 %s26, %s38
      %p66 = scmp.eq.s32.totalorder %s65, 0
      %s68 = sadd.s32 %s67, 1
      %s69 = scalar_select %p66, %s67, %s68
      %p72 = pneg %p66
      %p73 = scmp.eq.s32.totalorder %s19, 1
      %p74 = por %p72, %p73
      %p75 = scmp.ne.s32.totalorder %s67, %s70
      %p76 = scmp.eq.s32.totalorder %s19, 0
      %p77 = por %p75, %p76
      %p78 = scmp.ne.s32.totalorder %s67, %s70
      %p79 = scmp.eq.s32.totalorder %s24, 1
      %p80 = por %p78, %p79
      %p81 = scmp.ne.s32.totalorder %s70, %s71
      %p82 = scmp.eq.s32.totalorder %s24, 0
      %p83 = por %p81, %p82
      %p84 = scmp.ne.s32.totalorder %s70, %s71
      %p85 = scmp.eq.s32.totalorder %s25, 1
      %p86 = por %p84, %p85
      %p88 = scmp.ne.s32.totalorder %s71, %s87
      %p89 = scmp.eq.s32.totalorder %s25, 0
      %p90 = por %p88, %p89
      %s92 = sadd.s32 %s91, 1
      %p95 = scmp.eq.s32.totalorder %s19, 1
      %p96 = scmp.ne.s32.totalorder %s91, %s93
      %p97 = scmp.eq.s32.totalorder %s19, 0
      %p98 = por %p96, %p97
      %p99 = scmp.ne.s32.totalorder %s91, %s93
      %p100 = scmp.eq.s32.totalorder %s24, 1
      %p101 = por %p99, %p100
      %p102 = scmp.ne.s32.totalorder %s93, %s94
      %p103 = scmp.eq.s32.totalorder %s24, 0
      %p104 = por %p102, %p103
      %p105 = scmp.ne.s32.totalorder %s93, %s94
      %p106 = scmp.eq.s32.totalorder %s25, 1
      %p107 = por %p105, %p106
      %p109 = scmp.ne.s32.totalorder %s94, %s108
      %p110 = scmp.eq.s32.totalorder %s25, 0
      %p111 = por %p109, %p110
      %s113 = sadd.s32 %s112, 1
      %p116 = scmp.eq.s32.totalorder %s19, 1
      %p117 = scmp.ne.s32.totalorder %s112, %s114
      %p118 = scmp.eq.s32.totalorder %s19, 0
      %p119 = por %p117, %p118
      %p120 = scmp.ne.s32.totalorder %s112, %s114
      %p121 = scmp.eq.s32.totalorder %s24, 1
      %p122 = por %p120, %p121
      %p123 = scmp.ne.s32.totalorder %s114, %s115
      %p124 = scmp.eq.s32.totalorder %s24, 0
      %p125 = por %p123, %p124
      %p126 = scmp.ne.s32.totalorder %s114, %s115
      %p127 = scmp.eq.s32.totalorder %s25, 1
      %p128 = por %p126, %p127
      %p130 = scmp.ne.s32.totalorder %s115, %s129
      %p131 = scmp.eq.s32.totalorder %s25, 0
      %p132 = por %p130, %p131
      %s134 = sadd.s32 %s133, 1
      %p137 = scmp.eq.s32.totalorder %s19, 1
      %p138 = scmp.ne.s32.totalorder %s133, %s135
      %p139 = scmp.eq.s32.totalorder %s19, 0
      %p140 = por %p138, %p139
      %p141 = scmp.ne.s32.totalorder %s133, %s135
      %p142 = scmp.eq.s32.totalorder %s24, 1
      %p143 = por %p141, %p142
      %p144 = scmp.ne.s32.totalorder %s135, %s136
      %p145 = scmp.eq.s32.totalorder %s24, 0
      %p146 = por %p144, %p145
      %p147 = scmp.ne.s32.totalorder %s135, %s136
      %p148 = scmp.eq.s32.totalorder %s25, 1
      %p149 = por %p147, %p148
      %p151 = scmp.ne.s32.totalorder %s136, %s150
      %p152 = scmp.eq.s32.totalorder %s25, 0
      %p153 = por %p151, %p152
      %s155 = sadd.s32 %s154, 1
      %p158 = scmp.eq.s32.totalorder %s19, 1
      %p159 = scmp.ne.s32.totalorder %s154, %s156
      %p160 = scmp.eq.s32.totalorder %s19, 0
      %p161 = por %p159, %p160
      %p162 = scmp.ne.s32.totalorder %s154, %s156
      %p163 = scmp.eq.s32.totalorder %s24, 1
      %p164 = por %p162, %p163
      %p165 = scmp.ne.s32.totalorder %s156, %s157
      %p166 = scmp.eq.s32.totalorder %s24, 0
      %p167 = por %p165, %p166
      %p168 = scmp.ne.s32.totalorder %s156, %s157
      %p169 = scmp.eq.s32.totalorder %s25, 1
      %p170 = por %p168, %p169
      %p172 = scmp.ne.s32.totalorder %s157, %s171
      %p173 = scmp.eq.s32.totalorder %s25, 0
      %p174 = por %p172, %p173
      %s176 = sadd.s32 %s175, 1
      %p179 = scmp.eq.s32.totalorder %s19, 1
      %p180 = scmp.ne.s32.totalorder %s175, %s177
      %p181 = scmp.eq.s32.totalorder %s19, 0
      %p182 = por %p180, %p181
      %p183 = scmp.ne.s32.totalorder %s175, %s177
      %p184 = scmp.eq.s32.totalorder %s24, 1
      %p185 = por %p183, %p184
      %p186 = scmp.ne.s32.totalorder %s177, %s178
      %p187 = scmp.eq.s32.totalorder %s24, 0
      %p188 = por %p186, %p187
      %p189 = scmp.ne.s32.totalorder %s177, %s178
      %p190 = scmp.eq.s32.totalorder %s25, 1
      %p191 = por %p189, %p190
      %p193 = scmp.ne.s32.totalorder %s178, %s192
      %p194 = scmp.eq.s32.totalorder %s25, 0
      %p195 = por %p193, %p194
      %s196 = ssub.s32 %s26, %s38
      %s197 = ssub.s32 %s27, %s34
      %s198 = sor.u32 %s196, %s197
      %p199 = scmp.eq.s32.totalorder %s198, 0
      %s201 = sadd.s32 %s200, 1
      %s202 = scalar_select %p199, %s200, %s201
      %p205 = pneg %p199
      %p206 = scmp.eq.s32.totalorder %s19, 1
      %p207 = por %p205, %p206
      %p208 = scmp.ne.s32.totalorder %s200, %s203
      %p209 = scmp.eq.s32.totalorder %s19, 0
      %p210 = por %p208, %p209
      %p211 = scmp.ne.s32.totalorder %s200, %s203
      %p212 = scmp.eq.s32.totalorder %s24, 1
      %p213 = por %p211, %p212
      %p214 = scmp.ne.s32.totalorder %s203, %s204
      %p215 = scmp.eq.s32.totalorder %s24, 0
      %p216 = por %p214, %p215
      %p217 = scmp.ne.s32.totalorder %s203, %s204
      %p218 = scmp.eq.s32.totalorder %s25, 1
      %p219 = por %p217, %p218
      %p221 = scmp.ne.s32.totalorder %s204, %s220
      %p222 = scmp.eq.s32.totalorder %s25, 0
      %p223 = por %p221, %p222
      %p224 = scmp.le.s32.totalorder 1, %s19
      %p225 = scmp.lt.s32.totalorder %s19, 3
      %p226 = pnand %p224, %p225
      %p227 = pneg %p226
      // Predicated region
      $region9: #{tpu_custom_call.1} parent=5 // pred_check
        _
      $region10: #{tpu_custom_call.1} parent=5 // pred_check_branch
        %229 = sbr.rel (%p226) target = $region12
      $region11: #{tpu_custom_call.1} parent=5 // pred_region
        %s230 = ssub.s32 %s19, 1
        // Predicated region
        $region13: #{tpu_custom_call.1} parent=11 // pred_check
          %p231 = pneg %p104
        $region14: #{tpu_custom_call.1} parent=11 // pred_check_branch
          %233 = sbr.rel (%p231) target = $region16
        $region15: #{tpu_custom_call.1} parent=11 // pred_region
          _
        $region16: #{tpu_custom_call.1} parent=11 // pred_fallthru
          _
        // Predicated region
        $region17: #{tpu_custom_call.1} parent=11 // pred_check
          %p234 = pneg %p125
        $region18: #{tpu_custom_call.1} parent=11 // pred_check_branch
          %236 = sbr.rel (%p234) target = $region20
        $region19: #{tpu_custom_call.1} parent=11 // pred_region
          _
        $region20: #{tpu_custom_call.1} parent=11 // pred_fallthru
          _
        // Predicated region
        $region21: #{tpu_custom_call.1} parent=11 // pred_check
          %p237 = pneg %p146
        $region22: #{tpu_custom_call.1} parent=11 // pred_check_branch
          %239 = sbr.rel (%p237) target = $region24
        $region23: #{tpu_custom_call.1} parent=11 // pred_region
          _
        $region24: #{tpu_custom_call.1} parent=11 // pred_fallthru
          _
        // Predicated region
        $region25: #{tpu_custom_call.1} parent=11 // pred_check
          %p240 = pneg %p167
        $region26: #{tpu_custom_call.1} parent=11 // pred_check_branch
          %242 = sbr.rel (%p240) target = $region28
        $region27: #{tpu_custom_call.1} parent=11 // pred_region
          _
        $region28: #{tpu_custom_call.1} parent=11 // pred_fallthru
          _
        // Predicated region
        $region29: #{tpu_custom_call.1} parent=11 // pred_check
          %p243 = pneg %p188
        $region30: #{tpu_custom_call.1} parent=11 // pred_check_branch
          %245 = sbr.rel (%p243) target = $region32
        $region31: #{tpu_custom_call.1} parent=11 // pred_region
          _
        $region32: #{tpu_custom_call.1} parent=11 // pred_fallthru
          _
      $region12: #{tpu_custom_call.1} parent=5 // pred_fallthru
        _
      %p246 = scmp.lt.s32.totalorder %s19, 2
      // Predicated region
      $region33: #{tpu_custom_call.1} parent=5 // pred_check
        %p247 = pneg %p246
      $region34: #{tpu_custom_call.1} parent=5 // pred_check_branch
        %249 = sbr.rel (%p247) target = $region36
      $region35: #{tpu_custom_call.1} parent=5 // pred_region
        // Predicated region
        $region37: #{tpu_custom_call.1} parent=35 // pred_check
          %p250 = pneg %p51
        $region38: #{tpu_custom_call.1} parent=35 // pred_check_branch
          %252 = sbr.rel (%p250) target = $region40
        $region39: #{tpu_custom_call.1} parent=35 // pred_region
          %p253 = scmp.lt.s32.totalorder %s26, 1
          %s254 = scalar_select %p253, %s26, 1
          %s255 = smul.addr %s254, 2
          %s256 = smul.addr %s255, 8
          %s257 = scalar_lea.vmem %s0, %s256
        $region40: #{tpu_custom_call.1} parent=35 // pred_fallthru
          _
        // Predicated region
        $region41: #{tpu_custom_call.1} parent=35 // pred_check
          %p258 = pneg %p77
        $region42: #{tpu_custom_call.1} parent=35 // pred_check_branch
          %260 = sbr.rel (%p258) target = $region44
        $region43: #{tpu_custom_call.1} parent=35 // pred_region
          %p261 = scmp.lt.s32.totalorder %s26, 1
          %s262 = scalar_select %p261, %s26, 1
          %s263 = smul.addr %s262, 32
          %s264 = smul.addr %s263, 8
          %s265 = scalar_lea.vmem %s1, %s264
        $region44: #{tpu_custom_call.1} parent=35 // pred_fallthru
          _
      $region36: #{tpu_custom_call.1} parent=5 // pred_fallthru
        _
      %p266 = scmp.le.s32.totalorder 1, %s19
      %p267 = scmp.lt.s32.totalorder %s19, 3
      %p268 = pnand %p266, %p267
      %p269 = pneg %p268
      // Predicated region
      $region45: #{tpu_custom_call.1} parent=5 // pred_check
        _
      $region46: #{tpu_custom_call.1} parent=5 // pred_check_branch
        %271 = sbr.rel (%p268) target = $region48
      $region47: #{tpu_custom_call.1} parent=5 // pred_region
        %s272 = ssub.s32 %s19, 1
        %p273 = scmp.lt.s32.totalorder %s28, 1
        %s274 = scalar_select %p273, %s28, 1
        %s275 = smul.addr %s274, 2
        %s276 = smul.addr %s275, 8
        %s277 = scalar_lea.vmem %s0, %s276
        %p278 = pneg %p57
        %p279 = pneg %p54
        %p280 = scmp.lt.s32.totalorder %s28, 1
        %s281 = scalar_select %p280, %s28, 1
        %s282 = smul.addr %s281, 32
        %s283 = smul.addr %s282, 8
        %s284 = scalar_lea.vmem %s1, %s283
        %p285 = pneg %p83
        %p286 = pneg %p80
        %p287 = pneg %p104
        %p288 = pneg %p101
        %p289 = pneg %p125
        %p290 = pneg %p122
        %p291 = pneg %p146
        %p292 = pneg %p143
        %p293 = pneg %p167
        %p294 = pneg %p164
        %p295 = pneg %p188
        %p296 = pneg %p185
        %p297 = pneg %p216
        %p298 = pneg %p213
        %s299 = sand.u32 %s203, 1
        %s300 = scalar_lea.sflag [#allocation9], %s299
        %s301 = sand.u32 %s203, 1
        %s302 = smul.addr %s301, 16
        %s303 = scalar_lea.vmem [#allocation8], %s302
        %p304 = scmp.lt.s32.totalorder %s28, 1
        %s305 = scalar_select %p304, %s28, 1
        %s306 = smul.addr %s305, 2
        %s307 = smul.addr %s306, 8
        %s308 = scalar_lea.vmem %s0, %s307
        %p309 = scmp.lt.s32.totalorder %s28, 1
        %s310 = scalar_select %p309, %s28, 1
        %s311 = smul.addr %s310, 32
        %s312 = smul.addr %s311, 8
        %s313 = scalar_lea.vmem %s1, %s312
        %s314 = smul.u32 2, %s29
        %p315 = scmp.eq.s32.totalorder %s29, 0
        // Predicated region
        $region49: #{tpu_custom_call.1} parent=47 // pred_check
          %p316 = pneg %p315
        $region50: #{tpu_custom_call.1} parent=47 // pred_check_branch
          %318 = sbr.rel (%p316) target = $region52
        $region51: #{tpu_custom_call.1} parent=47 // pred_region
          %v319 = vld [vmem:[%s313] sm:$0xff]
          %v320 = vld [vmem:[%s313 + $0x8] sm:$0xff]
          %v321 = vld [vmem:[%s313 + $0x10] sm:$0xff]
          %v322 = vld [vmem:[%s313 + $0x18] sm:$0xff]
          %v323 = vld [vmem:[%s313 + $0x20] sm:$0xff]
          %v324 = vld [vmem:[%s313 + $0x28] sm:$0xff]
          %v325 = vld [vmem:[%s313 + $0x30] sm:$0xff]
          %v326 = vld [vmem:[%s313 + $0x38] sm:$0xff]
          %v327 = vld [vmem:[%s313 + $0x40] sm:$0xff]
          %v328 = vld [vmem:[%s313 + $0x48] sm:$0xff]
          %v329 = vld [vmem:[%s313 + $0x50] sm:$0xff]
          %v330 = vld [vmem:[%s313 + $0x58] sm:$0xff]
          %v331 = vld [vmem:[%s313 + $0x60] sm:$0xff]
          %v332 = vld [vmem:[%s313 + $0x68] sm:$0xff]
          %v333 = vld [vmem:[%s313 + $0x70] sm:$0xff]
          %v334 = vld [vmem:[%s313 + $0x78] sm:$0xff]
          %v335 = vld [vmem:[%s313 + $0x80] sm:$0xff]
          %v336 = vld [vmem:[%s313 + $0x88] sm:$0xff]
          %v337 = vld [vmem:[%s313 + $0x90] sm:$0xff]
          %v338 = vld [vmem:[%s313 + $0x98] sm:$0xff]
          %v339 = vld [vmem:[%s313 + $0xa0] sm:$0xff]
          %v340 = vld [vmem:[%s313 + $0xa8] sm:$0xff]
          %v341 = vld [vmem:[%s313 + $0xb0] sm:$0xff]
          %v342 = vld [vmem:[%s313 + $0xb8] sm:$0xff]
          %v343 = vld [vmem:[%s313 + $0xc0] sm:$0xff]
          %v344 = vld [vmem:[%s313 + $0xc8] sm:$0xff]
          %v345 = vld [vmem:[%s313 + $0xd0] sm:$0xff]
          %v346 = vld [vmem:[%s313 + $0xd8] sm:$0xff]
          %v347 = vld [vmem:[%s313 + $0xe0] sm:$0xff]
          %v348 = vld [vmem:[%s313 + $0xe8] sm:$0xff]
          %v349 = vld [vmem:[%s313 + $0xf0] sm:$0xff]
          %v350 = vld [vmem:[%s313 + $0xf8] sm:$0xff]
          %v351 = vld [vmem:[%s2] sm:$0xff]
          %v352 = vld [vmem:[#allocation6] sm:$0x1]
          %v354 = vlaneseq
          %v355 = vshrl.u32 %v354, 7
          %v356 = vsub.s32 0, %v355
          %v357 = vrot.slane %v352, %v356
          %vm359 = vcmask 64512
          %v361 = vsel %vm359, %v319, 0
          %v364 = vsel %vm359, %v320, 0
          %v367 = vsel %vm359, %v321, 0
          %v370 = vsel %vm359, %v322, 0
          %v373 = vsel %vm359, %v323, 0
          %v376 = vsel %vm359, %v324, 0
          %v379 = vsel %vm359, %v325, 0
          %v382 = vsel %vm359, %v326, 0
          %v385 = vsel %vm359, %v327, 0
          %v388 = vsel %vm359, %v328, 0
          %v391 = vsel %vm359, %v329, 0
          %v394 = vsel %vm359, %v330, 0
          %v397 = vsel %vm359, %v331, 0
          %v400 = vsel %vm359, %v332, 0
          %v403 = vsel %vm359, %v333, 0
          %v406 = vsel %vm359, %v334, 0
          %v409 = vsel %vm359, %v335, 0
          %v412 = vsel %vm359, %v336, 0
          %v415 = vsel %vm359, %v337, 0
          %v418 = vsel %vm359, %v338, 0
          %v421 = vsel %vm359, %v339, 0
          %v424 = vsel %vm359, %v340, 0
          %v427 = vsel %vm359, %v341, 0
          %v430 = vsel %vm359, %v342, 0
          %v433 = vsel %vm359, %v343, 0
          %v436 = vsel %vm359, %v344, 0
          %v439 = vsel %vm359, %v345, 0
          %v442 = vsel %vm359, %v346, 0
          %v445 = vsel %vm359, %v347, 0
          %v448 = vsel %vm359, %v348, 0
          %v451 = vsel %vm359, %v349, 0
          %v454 = vsel %vm359, %v350, 0
          %456 = vmatprep.subr.mxu0 0.0
          %457 = vmatpush1.msra.mxu0 0.0
          %458 = vmatprep.subr.mxu0 0.0
          %459 = vmatpush1.msra.mxu0 0.0
          %460 = vmatprep.subr.mxu0 0.0
          %461 = vmatpush1.msra.mxu0 0.0
          %462 = vmatprep.subr.mxu0 0.0
          %463 = vmatpush1.msra.mxu0 0.0
          %464 = vmatprep.subr.mxu0 0.0
          %465 = vmatpush1.msra.mxu0 0.0
          %466 = vmatprep.subr.mxu0 0.0
          %467 = vmatpush1.msra.mxu0 0.0
          %468 = vmatprep.subr.mxu0 0.0
          %469 = vmatpush1.msra.mxu0 0.0
          %470 = vmatprep.subr.mxu0 0.0
          %471 = vmatpush1.msra.mxu0 0.0
          %472 = vmatprep.subr.mxu0 0.0
          %473 = vmatpush1.msra.mxu0 0.0
          %474 = vmatprep.subr.mxu0 0.0
          %475 = vmatpush1.msra.mxu0 0.0
          %476 = vmatprep.subr.mxu0 0.0
          %477 = vmatpush1.msra.mxu0 0.0
          %478 = vmatprep.subr.mxu0 0.0
          %479 = vmatpush1.msra.mxu0 0.0
          %480 = vmatprep.subr.mxu0 0.0
          %481 = vmatpush1.msra.mxu0 0.0
          %482 = vmatprep.subr.mxu0 0.0
          %483 = vmatpush1.msra.mxu0 0.0
          %484 = vmatprep.subr.mxu0 0.0
          %485 = vmatpush1.msra.mxu0 0.0
          %486 = vmatprep.subr.mxu0 0.0
          %487 = vmatpush1.msra.mxu0 %v351
          %488 = vmatprep.subr.mxu0 0.0
          %489 = vmatpush2.msra.mxu0 0.0
          %490 = vmatprep.subr.mxu0 0.0
          %491 = vmatpush2.msra.mxu0 0.0
          %492 = vmatprep.subr.mxu0 0.0
          %493 = vmatpush2.msra.mxu0 0.0
          %494 = vmatprep.subr.mxu0 0.0
          %495 = vmatpush2.msra.mxu0 0.0
          %496 = vmatprep.subr.mxu0 0.0
          %497 = vmatpush2.msra.mxu0 0.0
          %498 = vmatprep.subr.mxu0 0.0
          %499 = vmatpush2.msra.mxu0 0.0
          %500 = vmatprep.subr.mxu0 0.0
          %501 = vmatpush2.msra.mxu0 0.0
          %502 = vmatprep.subr.mxu0 0.0
          %503 = vmatpush2.msra.mxu0 0.0
          %504 = vmatprep.subr.mxu0 0.0
          %505 = vmatpush2.msra.mxu0 0.0
          %506 = vmatprep.subr.mxu0 0.0
          %507 = vmatpush2.msra.mxu0 0.0
          %508 = vmatprep.subr.mxu0 0.0
          %509 = vmatpush2.msra.mxu0 0.0
          %510 = vmatprep.subr.mxu0 0.0
          %511 = vmatpush2.msra.mxu0 0.0
          %512 = vmatprep.subr.mxu0 0.0
          %513 = vmatpush2.msra.mxu0 0.0
          %514 = vmatprep.subr.mxu0 0.0
          %515 = vmatpush2.msra.mxu0 0.0
          %516 = vmatprep.subr.mxu0 0.0
          %517 = vmatpush2.msra.mxu0 0.0
          %518 = vmatprep.subr.mxu0 0.0
          %519 = vmatpush2.msra.mxu0 0.0
          %520 = vmatprep.mubr.f32.mxu0 0.0
          %521 = vmatmul.mubr.f32.gmra.mxu0 %v361
          %v522 = vpop.f32.mrf.mxu0
          %v523 = vadd.f32 %v357, %v522
          %v524 = vpop.f32.mrf.mxu0
          %525 = vmatprep.mubr.f32.mxu0 0.0
          %526 = vmatmul.mubr.f32.gmra.mxu0 %v364
          %v527 = vpop.f32.mrf.mxu0
          %v528 = vadd.f32 %v357, %v527
          %v529 = vpop.f32.mrf.mxu0
          %530 = vmatprep.mubr.f32.mxu0 0.0
          %531 = vmatmul.mubr.f32.gmra.mxu0 %v367
          %v532 = vpop.f32.mrf.mxu0
          %v533 = vadd.f32 %v357, %v532
          %v534 = vpop.f32.mrf.mxu0
          %535 = vmatprep.mubr.f32.mxu0 0.0
          %536 = vmatmul.mubr.f32.gmra.mxu0 %v370
          %v537 = vpop.f32.mrf.mxu0
          %v538 = vadd.f32 %v357, %v537
          %v539 = vpop.f32.mrf.mxu0
          %540 = vmatprep.mubr.f32.mxu0 0.0
          %541 = vmatmul.mubr.f32.gmra.mxu0 %v373
          %v542 = vpop.f32.mrf.mxu0
          %v543 = vadd.f32 %v357, %v542
          %v544 = vpop.f32.mrf.mxu0
          %545 = vmatprep.mubr.f32.mxu0 0.0
          %546 = vmatmul.mubr.f32.gmra.mxu0 %v376
          %v547 = vpop.f32.mrf.mxu0
          %v548 = vadd.f32 %v357, %v547
          %v549 = vpop.f32.mrf.mxu0
          %550 = vmatprep.mubr.f32.mxu0 0.0
          %551 = vmatmul.mubr.f32.gmra.mxu0 %v379
          %v552 = vpop.f32.mrf.mxu0
          %v553 = vadd.f32 %v357, %v552
          %v554 = vpop.f32.mrf.mxu0
          %555 = vmatprep.mubr.f32.mxu0 0.0
          %556 = vmatmul.mubr.f32.gmra.mxu0 %v382
          %v557 = vpop.f32.mrf.mxu0
          %v558 = vadd.f32 %v357, %v557
          %v559 = vpop.f32.mrf.mxu0
          %560 = vmatprep.mubr.f32.mxu0 0.0
          %561 = vmatmul.mubr.f32.gmra.mxu0 %v385
          %v562 = vpop.f32.mrf.mxu0
          %v563 = vadd.f32 %v357, %v562
          %v564 = vpop.f32.mrf.mxu0
          %565 = vmatprep.mubr.f32.mxu0 0.0
          %566 = vmatmul.mubr.f32.gmra.mxu0 %v388
          %v567 = vpop.f32.mrf.mxu0
          %v568 = vadd.f32 %v357, %v567
          %v569 = vpop.f32.mrf.mxu0
          %570 = vmatprep.mubr.f32.mxu0 0.0
          %571 = vmatmul.mubr.f32.gmra.mxu0 %v391
          %v572 = vpop.f32.mrf.mxu0
          %v573 = vadd.f32 %v357, %v572
          %v574 = vpop.f32.mrf.mxu0
          %575 = vmatprep.mubr.f32.mxu0 0.0
          %576 = vmatmul.mubr.f32.gmra.mxu0 %v394
          %v577 = vpop.f32.mrf.mxu0
          %v578 = vadd.f32 %v357, %v577
          %v579 = vpop.f32.mrf.mxu0
          %580 = vmatprep.mubr.f32.mxu0 0.0
          %581 = vmatmul.mubr.f32.gmra.mxu0 %v397
          %v582 = vpop.f32.mrf.mxu0
          %v583 = vadd.f32 %v357, %v582
          %v584 = vpop.f32.mrf.mxu0
          %585 = vmatprep.mubr.f32.mxu0 0.0
          %586 = vmatmul.mubr.f32.gmra.mxu0 %v400
          %v587 = vpop.f32.mrf.mxu0
          %v588 = vadd.f32 %v357, %v587
          %v589 = vpop.f32.mrf.mxu0
          %590 = vmatprep.mubr.f32.mxu0 0.0
          %591 = vmatmul.mubr.f32.gmra.mxu0 %v403
          %v592 = vpop.f32.mrf.mxu0
          %v593 = vadd.f32 %v357, %v592
          %v594 = vpop.f32.mrf.mxu0
          %595 = vmatprep.mubr.f32.mxu0 0.0
          %596 = vmatmul.mubr.f32.gmra.mxu0 %v406
          %v597 = vpop.f32.mrf.mxu0
          %v598 = vadd.f32 %v357, %v597
          %v599 = vpop.f32.mrf.mxu0
          %600 = vmatprep.mubr.f32.mxu0 0.0
          %601 = vmatmul.mubr.f32.gmra.mxu0 %v409
          %v602 = vpop.f32.mrf.mxu0
          %v603 = vadd.f32 %v357, %v602
          %v604 = vpop.f32.mrf.mxu0
          %605 = vmatprep.mubr.f32.mxu0 0.0
          %606 = vmatmul.mubr.f32.gmra.mxu0 %v412
          %v607 = vpop.f32.mrf.mxu0
          %v608 = vadd.f32 %v357, %v607
          %v609 = vpop.f32.mrf.mxu0
          %610 = vmatprep.mubr.f32.mxu0 0.0
          %611 = vmatmul.mubr.f32.gmra.mxu0 %v415
          %v612 = vpop.f32.mrf.mxu0
          %v613 = vadd.f32 %v357, %v612
          %v614 = vpop.f32.mrf.mxu0
          %615 = vmatprep.mubr.f32.mxu0 0.0
          %616 = vmatmul.mubr.f32.gmra.mxu0 %v418
          %v617 = vpop.f32.mrf.mxu0
          %v618 = vadd.f32 %v357, %v617
          %v619 = vpop.f32.mrf.mxu0
          %620 = vmatprep.mubr.f32.mxu0 0.0
          %621 = vmatmul.mubr.f32.gmra.mxu0 %v421
          %v622 = vpop.f32.mrf.mxu0
          %v623 = vadd.f32 %v357, %v622
          %v624 = vpop.f32.mrf.mxu0
          %625 = vmatprep.mubr.f32.mxu0 0.0
          %626 = vmatmul.mubr.f32.gmra.mxu0 %v424
          %v627 = vpop.f32.mrf.mxu0
          %v628 = vadd.f32 %v357, %v627
          %v629 = vpop.f32.mrf.mxu0
          %630 = vmatprep.mubr.f32.mxu0 0.0
          %631 = vmatmul.mubr.f32.gmra.mxu0 %v427
          %v632 = vpop.f32.mrf.mxu0
          %v633 = vadd.f32 %v357, %v632
          %v634 = vpop.f32.mrf.mxu0
          %635 = vmatprep.mubr.f32.mxu0 0.0
          %636 = vmatmul.mubr.f32.gmra.mxu0 %v430
          %v637 = vpop.f32.mrf.mxu0
          %v638 = vadd.f32 %v357, %v637
          %v639 = vpop.f32.mrf.mxu0
          %640 = vmatprep.mubr.f32.mxu0 0.0
          %641 = vmatmul.mubr.f32.gmra.mxu0 %v433
          %v642 = vpop.f32.mrf.mxu0
          %v643 = vadd.f32 %v357, %v642
          %v644 = vpop.f32.mrf.mxu0
          %645 = vmatprep.mubr.f32.mxu0 0.0
          %646 = vmatmul.mubr.f32.gmra.mxu0 %v436
          %v647 = vpop.f32.mrf.mxu0
          %v648 = vadd.f32 %v357, %v647
          %v649 = vpop.f32.mrf.mxu0
          %650 = vmatprep.mubr.f32.mxu0 0.0
          %651 = vmatmul.mubr.f32.gmra.mxu0 %v439
          %v652 = vpop.f32.mrf.mxu0
          %v653 = vadd.f32 %v357, %v652
          %v654 = vpop.f32.mrf.mxu0
          %655 = vmatprep.mubr.f32.mxu0 0.0
          %656 = vmatmul.mubr.f32.gmra.mxu0 %v442
          %v657 = vpop.f32.mrf.mxu0
          %v658 = vadd.f32 %v357, %v657
          %v659 = vpop.f32.mrf.mxu0
          %660 = vmatprep.mubr.f32.mxu0 0.0
          %661 = vmatmul.mubr.f32.gmra.mxu0 %v445
          %v662 = vpop.f32.mrf.mxu0
          %v663 = vadd.f32 %v357, %v662
          %v664 = vpop.f32.mrf.mxu0
          %665 = vmatprep.mubr.f32.mxu0 0.0
          %666 = vmatmul.mubr.f32.gmra.mxu0 %v448
          %v667 = vpop.f32.mrf.mxu0
          %v668 = vadd.f32 %v357, %v667
          %v669 = vpop.f32.mrf.mxu0
          %670 = vmatprep.mubr.f32.mxu0 0.0
          %671 = vmatmul.mubr.f32.gmra.mxu0 %v451
          %v672 = vpop.f32.mrf.mxu0
          %v673 = vadd.f32 %v357, %v672
          %v674 = vpop.f32.mrf.mxu0
          %675 = vmatprep.mubr.f32.mxu0 0.0
          %676 = vmatmul.mubr.f32.gmra.mxu0 %v454
          %v677 = vpop.f32.mrf.mxu0
          %v678 = vadd.f32 %v357, %v677
          %v679 = vpop.f32.mrf.mxu0
          %680 = vdwg.mxu0
          %vm681 = vcmask 7168
          %682 = vst.msk [vmem:[#allocation2] sm:$0xff] %vm681, %v523
          %683 = vst.msk [vmem:[#allocation2 + $0x8] sm:$0xff] %vm681, %v528
          %684 = vst.msk [vmem:[#allocation2 + $0x10] sm:$0xff] %vm681, %v533
          %685 = vst.msk [vmem:[#allocation2 + $0x18] sm:$0xff] %vm681, %v538
          %686 = vst.msk [vmem:[#allocation2 + $0x20] sm:$0xff] %vm681, %v543
          %687 = vst.msk [vmem:[#allocation2 + $0x28] sm:$0xff] %vm681, %v548
          %688 = vst.msk [vmem:[#allocation2 + $0x30] sm:$0xff] %vm681, %v553
          %689 = vst.msk [vmem:[#allocation2 + $0x38] sm:$0xff] %vm681, %v558
          %690 = vst.msk [vmem:[#allocation2 + $0x40] sm:$0xff] %vm681, %v563
          %691 = vst.msk [vmem:[#allocation2 + $0x48] sm:$0xff] %vm681, %v568
          %692 = vst.msk [vmem:[#allocation2 + $0x50] sm:$0xff] %vm681, %v573
          %693 = vst.msk [vmem:[#allocation2 + $0x58] sm:$0xff] %vm681, %v578
          %694 = vst.msk [vmem:[#allocation2 + $0x60] sm:$0xff] %vm681, %v583
          %695 = vst.msk [vmem:[#allocation2 + $0x68] sm:$0xff] %vm681, %v588
          %696 = vst.msk [vmem:[#allocation2 + $0x70] sm:$0xff] %vm681, %v593
          %697 = vst.msk [vmem:[#allocation2 + $0x78] sm:$0xff] %vm681, %v598
          %698 = vst.msk [vmem:[#allocation2 + $0x80] sm:$0xff] %vm681, %v603
          %699 = vst.msk [vmem:[#allocation2 + $0x88] sm:$0xff] %vm681, %v608
          %700 = vst.msk [vmem:[#allocation2 + $0x90] sm:$0xff] %vm681, %v613
          %701 = vst.msk [vmem:[#allocation2 + $0x98] sm:$0xff] %vm681, %v618
          %702 = vst.msk [vmem:[#allocation2 + $0xa0] sm:$0xff] %vm681, %v623
          %703 = vst.msk [vmem:[#allocation2 + $0xa8] sm:$0xff] %vm681, %v628
          %704 = vst.msk [vmem:[#allocation2 + $0xb0] sm:$0xff] %vm681, %v633
          %705 = vst.msk [vmem:[#allocation2 + $0xb8] sm:$0xff] %vm681, %v638
          %706 = vst.msk [vmem:[#allocation2 + $0xc0] sm:$0xff] %vm681, %v643
          %707 = vst.msk [vmem:[#allocation2 + $0xc8] sm:$0xff] %vm681, %v648
          %708 = vst.msk [vmem:[#allocation2 + $0xd0] sm:$0xff] %vm681, %v653
          %709 = vst.msk [vmem:[#allocation2 + $0xd8] sm:$0xff] %vm681, %v658
          %710 = vst.msk [vmem:[#allocation2 + $0xe0] sm:$0xff] %vm681, %v663
          %711 = vst.msk [vmem:[#allocation2 + $0xe8] sm:$0xff] %vm681, %v668
          %712 = vst.msk [vmem:[#allocation2 + $0xf0] sm:$0xff] %vm681, %v673
          %713 = vst.msk [vmem:[#allocation2 + $0xf8] sm:$0xff] %vm681, %v678
          %v714 = vld [vmem:[%s4] sm:$0xff]
          %v715 = vld [vmem:[%s4 + $0x8] sm:$0x1]
          %v716 = vld [vmem:[%s308] sm:$0xff]
          %v717 = vld [vmem:[%s308 + $0x8] sm:$0xff]
          %v718 = vld [vmem:[%s5] sm:$0xff]
          %v719 = vld [vmem:[%s5 + $0x8] sm:$0x1]
          %721 = vset.pattern.permute.xlu0 0
          %722 = vperm.xlu0 %721, %v718
          %v723 = vpop.permute.xlu0 %722
          %726 = vset.pattern.permute.xlu0 0
          %727 = vperm.xlu0 %726, %v719
          %v728 = vpop.permute.xlu0 %727
          %v731 = vsel %vm359, %v714, 0
          %v734 = vsel %vm359, %v715, 0
          %736 = vmatprep.subr.mxu0 0.0
          %737 = vmatpush1.msra.mxu0 0.0
          %738 = vmatprep.subr.mxu0 0.0
          %739 = vmatpush1.msra.mxu0 0.0
          %740 = vmatprep.subr.mxu0 0.0
          %741 = vmatpush1.msra.mxu0 0.0
          %742 = vmatprep.subr.mxu0 0.0
          %743 = vmatpush1.msra.mxu0 0.0
          %744 = vmatprep.subr.mxu0 0.0
          %745 = vmatpush1.msra.mxu0 0.0
          %746 = vmatprep.subr.mxu0 0.0
          %747 = vmatpush1.msra.mxu0 0.0
          %748 = vmatprep.subr.mxu0 0.0
          %749 = vmatpush1.msra.mxu0 0.0
          %750 = vmatprep.subr.mxu0 0.0
          %751 = vmatpush1.msra.mxu0 0.0
          %752 = vmatprep.subr.mxu0 0.0
          %753 = vmatpush1.msra.mxu0 0.0
          %754 = vmatprep.subr.mxu0 0.0
          %755 = vmatpush1.msra.mxu0 0.0
          %756 = vmatprep.subr.mxu0 0.0
          %757 = vmatpush1.msra.mxu0 0.0
          %758 = vmatprep.subr.mxu0 0.0
          %759 = vmatpush1.msra.mxu0 0.0
          %760 = vmatprep.subr.mxu0 0.0
          %761 = vmatpush1.msra.mxu0 0.0
          %762 = vmatprep.subr.mxu0 0.0
          %763 = vmatpush1.msra.mxu0 0.0
          %764 = vmatprep.subr.mxu0 0.0
          %765 = vmatpush1.msra.mxu0 0.0
          %766 = vmatprep.subr.mxu0 %v717
          %767 = vmatpush1.msra.mxu0 %v716
          %768 = vmatprep.subr.mxu0 0.0
          %769 = vmatpush2.msra.mxu0 0.0
          %770 = vmatprep.subr.mxu0 0.0
          %771 = vmatpush2.msra.mxu0 0.0
          %772 = vmatprep.subr.mxu0 0.0
          %773 = vmatpush2.msra.mxu0 0.0
          %774 = vmatprep.subr.mxu0 0.0
          %775 = vmatpush2.msra.mxu0 0.0
          %776 = vmatprep.subr.mxu0 0.0
          %777 = vmatpush2.msra.mxu0 0.0
          %778 = vmatprep.subr.mxu0 0.0
          %779 = vmatpush2.msra.mxu0 0.0
          %780 = vmatprep.subr.mxu0 0.0
          %781 = vmatpush2.msra.mxu0 0.0
          %782 = vmatprep.subr.mxu0 0.0
          %783 = vmatpush2.msra.mxu0 0.0
          %784 = vmatprep.subr.mxu0 0.0
          %785 = vmatpush2.msra.mxu0 0.0
          %786 = vmatprep.subr.mxu0 0.0
          %787 = vmatpush2.msra.mxu0 0.0
          %788 = vmatprep.subr.mxu0 0.0
          %789 = vmatpush2.msra.mxu0 0.0
          %790 = vmatprep.subr.mxu0 0.0
          %791 = vmatpush2.msra.mxu0 0.0
          %792 = vmatprep.subr.mxu0 0.0
          %793 = vmatpush2.msra.mxu0 0.0
          %794 = vmatprep.subr.mxu0 0.0
          %795 = vmatpush2.msra.mxu0 0.0
          %796 = vmatprep.subr.mxu0 0.0
          %797 = vmatpush2.msra.mxu0 0.0
          %798 = vmatprep.subr.mxu0 0.0
          %799 = vmatpush2.msra.mxu0 0.0
          %800 = vmatprep.mubr.f32.mxu0 0.0
          %801 = vmatmul.mubr.f32.gmra.mxu0 %v731
          %v802 = vpop.f32.mrf.mxu0
          %v803 = vadd.f32 %v723, %v802
          %v804 = vpop.f32.mrf.mxu0
          %v805 = vadd.f32 %v723, %v804
          %806 = vmatprep.mubr.f32.mxu0 0.0
          %807 = vmatmul.mubr.f32.gmra.mxu0 %v734
          %v808 = vpop.f32.mrf.mxu0
          %v809 = vadd.f32 %v728, %v808
          %v810 = vpop.f32.mrf.mxu0
          %v811 = vadd.f32 %v728, %v810
          %812 = vdwg.mxu0
          %v815 = vcombine.low %v803, %v805
          %v817 = vunpack.c.l.s4 1966171168
          %v818 = vunpack.c.0.s8 %v817
          %v819 = vlaneseq
          %v820 = vshrl.u32 %v819, 7
          %v821 = vsub.s32 %v818, %v820
          %v822 = vrot.slane %v815, %v821
          %v824 = vunpack.c.l.s4 1966171168
          %v825 = vunpack.c.0.s8 %v824
          %v826 = vlaneseq
          %v827 = vshrl.u32 %v826, 7
          %v828 = vsub.s32 %v825, %v827
          %v829 = vrot.slane %v822, %v828
          %v831 = vlaneseq
          %vm832 = vcmp.ge.s32.totalorder %v831, 0
          %vm833 = vcmp.lt.s32.totalorder %v831, 256
          %vm834 = vmand %vm832, %vm833
          %835 = vst.msk [vmem:[#allocation3] sm:$0x3] %vm834, %v829
          %vm838 = vcmask 1046528
          %v839 = vrot.slane %v803, 1
          %v840 = vrot.slane %v809, 1
          %v841 = vsel %vm838, %v839, %v840
          %v842 = vrot.slane %v805, 1
          %v843 = vrot.slane %v811, 1
          %v844 = vsel %vm838, %v842, %v843
          %847 = vst [vmem:[#allocation4] sm:$0xff] %v841
          %848 = vst [vmem:[#allocation4 + $0x8] sm:$0xff] %v844
        $region52: #{tpu_custom_call.1} parent=47 // pred_fallthru
          _
        %s849 = smul.u32 %s29, 256
        %s850 = scalar_lea.vmem [#allocation2], %s849
        %v851 = vld [vmem:[%s850] sm:$0xff]
        %v852 = vld [vmem:[%s850 + $0x8] sm:$0xff]
        %v853 = vld [vmem:[%s850 + $0x10] sm:$0xff]
        %v854 = vld [vmem:[%s850 + $0x18] sm:$0xff]
        %v855 = vld [vmem:[%s850 + $0x20] sm:$0xff]
        %v856 = vld [vmem:[%s850 + $0x28] sm:$0xff]
        %v857 = vld [vmem:[%s850 + $0x30] sm:$0xff]
        %v858 = vld [vmem:[%s850 + $0x38] sm:$0xff]
        %v859 = vld [vmem:[%s850 + $0x40] sm:$0xff]
        %v860 = vld [vmem:[%s850 + $0x48] sm:$0xff]
        %v861 = vld [vmem:[%s850 + $0x50] sm:$0xff]
        %v862 = vld [vmem:[%s850 + $0x58] sm:$0xff]
        %v863 = vld [vmem:[%s850 + $0x60] sm:$0xff]
        %v864 = vld [vmem:[%s850 + $0x68] sm:$0xff]
        %v865 = vld [vmem:[%s850 + $0x70] sm:$0xff]
        %v866 = vld [vmem:[%s850 + $0x78] sm:$0xff]
        %v867 = vld [vmem:[%s850 + $0x80] sm:$0xff]
        %v868 = vld [vmem:[%s850 + $0x88] sm:$0xff]
        %v869 = vld [vmem:[%s850 + $0x90] sm:$0xff]
        %v870 = vld [vmem:[%s850 + $0x98] sm:$0xff]
        %v871 = vld [vmem:[%s850 + $0xa0] sm:$0xff]
        %v872 = vld [vmem:[%s850 + $0xa8] sm:$0xff]
        %v873 = vld [vmem:[%s850 + $0xb0] sm:$0xff]
        %v874 = vld [vmem:[%s850 + $0xb8] sm:$0xff]
        %v875 = vld [vmem:[%s850 + $0xc0] sm:$0xff]
        %v876 = vld [vmem:[%s850 + $0xc8] sm:$0xff]
        %v877 = vld [vmem:[%s850 + $0xd0] sm:$0xff]
        %v878 = vld [vmem:[%s850 + $0xd8] sm:$0xff]
        %v879 = vld [vmem:[%s850 + $0xe0] sm:$0xff]
        %v880 = vld [vmem:[%s850 + $0xe8] sm:$0xff]
        %v881 = vld [vmem:[%s850 + $0xf0] sm:$0xff]
        %v882 = vld [vmem:[%s850 + $0xf8] sm:$0xff]
        %v883 = vld [vmem:[#allocation3] sm:$0x3]
        %885 = vset.pattern.permute.xlu0 0
        %886 = vperm.xlu0 %885, %v851
        %v887 = vpop.permute.xlu0 %886
        %890 = vset.pattern.permute.xlu0 0
        %891 = vperm.xlu0 %890, %v852
        %v892 = vpop.permute.xlu0 %891
        %895 = vset.pattern.permute.xlu0 0
        %896 = vperm.xlu0 %895, %v853
        %v897 = vpop.permute.xlu0 %896
        %900 = vset.pattern.permute.xlu0 0
        %901 = vperm.xlu0 %900, %v854
        %v902 = vpop.permute.xlu0 %901
        %905 = vset.pattern.permute.xlu0 0
        %906 = vperm.xlu0 %905, %v855
        %v907 = vpop.permute.xlu0 %906
        %910 = vset.pattern.permute.xlu0 0
        %911 = vperm.xlu0 %910, %v856
        %v912 = vpop.permute.xlu0 %911
        %915 = vset.pattern.permute.xlu0 0
        %916 = vperm.xlu0 %915, %v857
        %v917 = vpop.permute.xlu0 %916
        %920 = vset.pattern.permute.xlu0 0
        %921 = vperm.xlu0 %920, %v858
        %v922 = vpop.permute.xlu0 %921
        %925 = vset.pattern.permute.xlu0 0
        %926 = vperm.xlu0 %925, %v859
        %v927 = vpop.permute.xlu0 %926
        %930 = vset.pattern.permute.xlu0 0
        %931 = vperm.xlu0 %930, %v860
        %v932 = vpop.permute.xlu0 %931
        %935 = vset.pattern.permute.xlu0 0
        %936 = vperm.xlu0 %935, %v861
        %v937 = vpop.permute.xlu0 %936
        %940 = vset.pattern.permute.xlu0 0
        %941 = vperm.xlu0 %940, %v862
        %v942 = vpop.permute.xlu0 %941
        %945 = vset.pattern.permute.xlu0 0
        %946 = vperm.xlu0 %945, %v863
        %v947 = vpop.permute.xlu0 %946
        %950 = vset.pattern.permute.xlu0 0
        %951 = vperm.xlu0 %950, %v864
        %v952 = vpop.permute.xlu0 %951
        %955 = vset.pattern.permute.xlu0 0
        %956 = vperm.xlu0 %955, %v865
        %v957 = vpop.permute.xlu0 %956
        %960 = vset.pattern.permute.xlu0 0
        %961 = vperm.xlu0 %960, %v866
        %v962 = vpop.permute.xlu0 %961
        %965 = vset.pattern.permute.xlu0 0
        %966 = vperm.xlu0 %965, %v867
        %v967 = vpop.permute.xlu0 %966
        %970 = vset.pattern.permute.xlu0 0
        %971 = vperm.xlu0 %970, %v868
        %v972 = vpop.permute.xlu0 %971
        %975 = vset.pattern.permute.xlu0 0
        %976 = vperm.xlu0 %975, %v869
        %v977 = vpop.permute.xlu0 %976
        %980 = vset.pattern.permute.xlu0 0
        %981 = vperm.xlu0 %980, %v870
        %v982 = vpop.permute.xlu0 %981
        %985 = vset.pattern.permute.xlu0 0
        %986 = vperm.xlu0 %985, %v871
        %v987 = vpop.permute.xlu0 %986
        %990 = vset.pattern.permute.xlu0 0
        %991 = vperm.xlu0 %990, %v872
        %v992 = vpop.permute.xlu0 %991
        %995 = vset.pattern.permute.xlu0 0
        %996 = vperm.xlu0 %995, %v873
        %v997 = vpop.permute.xlu0 %996
        %1000 = vset.pattern.permute.xlu0 0
        %1001 = vperm.xlu0 %1000, %v874
        %v1002 = vpop.permute.xlu0 %1001
        %1005 = vset.pattern.permute.xlu0 0
        %1006 = vperm.xlu0 %1005, %v875
        %v1007 = vpop.permute.xlu0 %1006
        %1010 = vset.pattern.permute.xlu0 0
        %1011 = vperm.xlu0 %1010, %v876
        %v1012 = vpop.permute.xlu0 %1011
        %1015 = vset.pattern.permute.xlu0 0
        %1016 = vperm.xlu0 %1015, %v877
        %v1017 = vpop.permute.xlu0 %1016
        %1020 = vset.pattern.permute.xlu0 0
        %1021 = vperm.xlu0 %1020, %v878
        %v1022 = vpop.permute.xlu0 %1021
        %1025 = vset.pattern.permute.xlu0 0
        %1026 = vperm.xlu0 %1025, %v879
        %v1027 = vpop.permute.xlu0 %1026
        %1030 = vset.pattern.permute.xlu0 0
        %1031 = vperm.xlu0 %1030, %v880
        %v1032 = vpop.permute.xlu0 %1031
        %1035 = vset.pattern.permute.xlu0 0
        %1036 = vperm.xlu0 %1035, %v881
        %v1037 = vpop.permute.xlu0 %1036
        %1040 = vset.pattern.permute.xlu0 0
        %1041 = vperm.xlu0 %1040, %v882
        %v1042 = vpop.permute.xlu0 %1041
        %v1045 = vlaneseq
        %v1046 = vshrl.u32 %v1045, 7
        %v1047 = vsub.s32 0, %v1046
        %v1048 = vrot.slane %v883, %v1047
        %v1049 = vlaneseq
        %v1050 = vshrl.u32 %v1049, 7
        %v1051 = vsub.s32 1, %v1050
        %v1052 = vrot.slane %v883, %v1051
        %v1055 = vmul.f32 %v887, %v1048
        %v1056 = vmul.f32 %v887, %v1052
        %v1057 = vmul.f32 %v892, %v1048
        %v1058 = vmul.f32 %v892, %v1052
        %v1059 = vmul.f32 %v897, %v1048
        %v1060 = vmul.f32 %v897, %v1052
        %v1061 = vmul.f32 %v902, %v1048
        %v1062 = vmul.f32 %v902, %v1052
        %v1063 = vmul.f32 %v907, %v1048
        %v1064 = vmul.f32 %v907, %v1052
        %v1065 = vmul.f32 %v912, %v1048
        %v1066 = vmul.f32 %v912, %v1052
        %v1067 = vmul.f32 %v917, %v1048
        %v1068 = vmul.f32 %v917, %v1052
        %v1069 = vmul.f32 %v922, %v1048
        %v1070 = vmul.f32 %v922, %v1052
        %v1071 = vmul.f32 %v927, %v1048
        %v1072 = vmul.f32 %v927, %v1052
        %v1073 = vmul.f32 %v932, %v1048
        %v1074 = vmul.f32 %v932, %v1052
        %v1075 = vmul.f32 %v937, %v1048
        %v1076 = vmul.f32 %v937, %v1052
        %v1077 = vmul.f32 %v942, %v1048
        %v1078 = vmul.f32 %v942, %v1052
        %v1079 = vmul.f32 %v947, %v1048
        %v1080 = vmul.f32 %v947, %v1052
        %v1081 = vmul.f32 %v952, %v1048
        %v1082 = vmul.f32 %v952, %v1052
        %v1083 = vmul.f32 %v957, %v1048
        %v1084 = vmul.f32 %v957, %v1052
        %v1085 = vmul.f32 %v962, %v1048
        %v1086 = vmul.f32 %v962, %v1052
        %v1087 = vmul.f32 %v967, %v1048
        %v1088 = vmul.f32 %v967, %v1052
        %v1089 = vmul.f32 %v972, %v1048
        %v1090 = vmul.f32 %v972, %v1052
        %v1091 = vmul.f32 %v977, %v1048
        %v1092 = vmul.f32 %v977, %v1052
        %v1093 = vmul.f32 %v982, %v1048
        %v1094 = vmul.f32 %v982, %v1052
        %v1095 = vmul.f32 %v987, %v1048
        %v1096 = vmul.f32 %v987, %v1052
        %v1097 = vmul.f32 %v992, %v1048
        %v1098 = vmul.f32 %v992, %v1052
        %v1099 = vmul.f32 %v997, %v1048
        %v1100 = vmul.f32 %v997, %v1052
        %v1101 = vmul.f32 %v1002, %v1048
        %v1102 = vmul.f32 %v1002, %v1052
        %v1103 = vmul.f32 %v1007, %v1048
        %v1104 = vmul.f32 %v1007, %v1052
        %v1105 = vmul.f32 %v1012, %v1048
        %v1106 = vmul.f32 %v1012, %v1052
        %v1107 = vmul.f32 %v1017, %v1048
        %v1108 = vmul.f32 %v1017, %v1052
        %v1109 = vmul.f32 %v1022, %v1048
        %v1110 = vmul.f32 %v1022, %v1052
        %v1111 = vmul.f32 %v1027, %v1048
        %v1112 = vmul.f32 %v1027, %v1052
        %v1113 = vmul.f32 %v1032, %v1048
        %v1114 = vmul.f32 %v1032, %v1052
        %v1115 = vmul.f32 %v1037, %v1048
        %v1116 = vmul.f32 %v1037, %v1052
        %v1117 = vmul.f32 %v1042, %v1048
        %v1118 = vmul.f32 %v1042, %v1052
        %1119 = vst [vmem:[#allocation5] sm:$0xff] %v1055
        %1120 = vst [vmem:[#allocation5 + $0x8] sm:$0xff] %v1056
        %1121 = vst [vmem:[#allocation5 + $0x10] sm:$0xff] %v1057
        %1122 = vst [vmem:[#allocation5 + $0x18] sm:$0xff] %v1058
        %1123 = vst [vmem:[#allocation5 + $0x20] sm:$0xff] %v1059
        %1124 = vst [vmem:[#allocation5 + $0x28] sm:$0xff] %v1060
        %1125 = vst [vmem:[#allocation5 + $0x30] sm:$0xff] %v1061
        %1126 = vst [vmem:[#allocation5 + $0x38] sm:$0xff] %v1062
        %1127 = vst [vmem:[#allocation5 + $0x40] sm:$0xff] %v1063
        %1128 = vst [vmem:[#allocation5 + $0x48] sm:$0xff] %v1064
        %1129 = vst [vmem:[#allocation5 + $0x50] sm:$0xff] %v1065
        %1130 = vst [vmem:[#allocation5 + $0x58] sm:$0xff] %v1066
        %1131 = vst [vmem:[#allocation5 + $0x60] sm:$0xff] %v1067
        %1132 = vst [vmem:[#allocation5 + $0x68] sm:$0xff] %v1068
        %1133 = vst [vmem:[#allocation5 + $0x70] sm:$0xff] %v1069
        %1134 = vst [vmem:[#allocation5 + $0x78] sm:$0xff] %v1070
        %1135 = vst [vmem:[#allocation5 + $0x80] sm:$0xff] %v1071
        %1136 = vst [vmem:[#allocation5 + $0x88] sm:$0xff] %v1072
        %1137 = vst [vmem:[#allocation5 + $0x90] sm:$0xff] %v1073
        %1138 = vst [vmem:[#allocation5 + $0x98] sm:$0xff] %v1074
        %1139 = vst [vmem:[#allocation5 + $0xa0] sm:$0xff] %v1075
        %1140 = vst [vmem:[#allocation5 + $0xa8] sm:$0xff] %v1076
        %1141 = vst [vmem:[#allocation5 + $0xb0] sm:$0xff] %v1077
        %1142 = vst [vmem:[#allocation5 + $0xb8] sm:$0xff] %v1078
        %1143 = vst [vmem:[#allocation5 + $0xc0] sm:$0xff] %v1079
        %1144 = vst [vmem:[#allocation5 + $0xc8] sm:$0xff] %v1080
        %1145 = vst [vmem:[#allocation5 + $0xd0] sm:$0xff] %v1081
        %1146 = vst [vmem:[#allocation5 + $0xd8] sm:$0xff] %v1082
        %1147 = vst [vmem:[#allocation5 + $0xe0] sm:$0xff] %v1083
        %1148 = vst [vmem:[#allocation5 + $0xe8] sm:$0xff] %v1084
        %1149 = vst [vmem:[#allocation5 + $0xf0] sm:$0xff] %v1085
        %1150 = vst [vmem:[#allocation5 + $0xf8] sm:$0xff] %v1086
        %1151 = vst [vmem:[#allocation5 + $0x100] sm:$0xff] %v1087
        %1152 = vst [vmem:[#allocation5 + $0x108] sm:$0xff] %v1088
        %1153 = vst [vmem:[#allocation5 + $0x110] sm:$0xff] %v1089
        %1154 = vst [vmem:[#allocation5 + $0x118] sm:$0xff] %v1090
        %1155 = vst [vmem:[#allocation5 + $0x120] sm:$0xff] %v1091
        %1156 = vst [vmem:[#allocation5 + $0x128] sm:$0xff] %v1092
        %1157 = vst [vmem:[#allocation5 + $0x130] sm:$0xff] %v1093
        %1158 = vst [vmem:[#allocation5 + $0x138] sm:$0xff] %v1094
        %1159 = vst [vmem:[#allocation5 + $0x140] sm:$0xff] %v1095
        %1160 = vst [vmem:[#allocation5 + $0x148] sm:$0xff] %v1096
        %1161 = vst [vmem:[#allocation5 + $0x150] sm:$0xff] %v1097
        %1162 = vst [vmem:[#allocation5 + $0x158] sm:$0xff] %v1098
        %1163 = vst [vmem:[#allocation5 + $0x160] sm:$0xff] %v1099
        %1164 = vst [vmem:[#allocation5 + $0x168] sm:$0xff] %v1100
        %1165 = vst [vmem:[#allocation5 + $0x170] sm:$0xff] %v1101
        %1166 = vst [vmem:[#allocation5 + $0x178] sm:$0xff] %v1102
        %1167 = vst [vmem:[#allocation5 + $0x180] sm:$0xff] %v1103
        %1168 = vst [vmem:[#allocation5 + $0x188] sm:$0xff] %v1104
        %1169 = vst [vmem:[#allocation5 + $0x190] sm:$0xff] %v1105
        %1170 = vst [vmem:[#allocation5 + $0x198] sm:$0xff] %v1106
        %1171 = vst [vmem:[#allocation5 + $0x1a0] sm:$0xff] %v1107
        %1172 = vst [vmem:[#allocation5 + $0x1a8] sm:$0xff] %v1108
        %1173 = vst [vmem:[#allocation5 + $0x1b0] sm:$0xff] %v1109
        %1174 = vst [vmem:[#allocation5 + $0x1b8] sm:$0xff] %v1110
        %1175 = vst [vmem:[#allocation5 + $0x1c0] sm:$0xff] %v1111
        %1176 = vst [vmem:[#allocation5 + $0x1c8] sm:$0xff] %v1112
        %1177 = vst [vmem:[#allocation5 + $0x1d0] sm:$0xff] %v1113
        %1178 = vst [vmem:[#allocation5 + $0x1d8] sm:$0xff] %v1114
        %1179 = vst [vmem:[#allocation5 + $0x1e0] sm:$0xff] %v1115
        %1180 = vst [vmem:[#allocation5 + $0x1e8] sm:$0xff] %v1116
        %1181 = vst [vmem:[#allocation5 + $0x1f0] sm:$0xff] %v1117
        %1182 = vst [vmem:[#allocation5 + $0x1f8] sm:$0xff] %v1118
        %v1183 = vld [vmem:[#allocation5] sm:$0xff]
        %v1184 = vld [vmem:[#allocation5 + $0x8] sm:$0xff]
        %v1185 = vld [vmem:[#allocation5 + $0x10] sm:$0xff]
        %v1186 = vld [vmem:[#allocation5 + $0x18] sm:$0xff]
        %v1187 = vld [vmem:[#allocation5 + $0x20] sm:$0xff]
        %v1188 = vld [vmem:[#allocation5 + $0x28] sm:$0xff]
        %v1189 = vld [vmem:[#allocation5 + $0x30] sm:$0xff]
        %v1190 = vld [vmem:[#allocation5 + $0x38] sm:$0xff]
        %v1191 = vld [vmem:[#allocation5 + $0x40] sm:$0xff]
        %v1192 = vld [vmem:[#allocation5 + $0x48] sm:$0xff]
        %v1193 = vld [vmem:[#allocation5 + $0x50] sm:$0xff]
        %v1194 = vld [vmem:[#allocation5 + $0x58] sm:$0xff]
        %v1195 = vld [vmem:[#allocation5 + $0x60] sm:$0xff]
        %v1196 = vld [vmem:[#allocation5 + $0x68] sm:$0xff]
        %v1197 = vld [vmem:[#allocation5 + $0x70] sm:$0xff]
        %v1198 = vld [vmem:[#allocation5 + $0x78] sm:$0xff]
        %v1199 = vld [vmem:[#allocation5 + $0x80] sm:$0xff]
        %v1200 = vld [vmem:[#allocation5 + $0x88] sm:$0xff]
        %v1201 = vld [vmem:[#allocation5 + $0x90] sm:$0xff]
        %v1202 = vld [vmem:[#allocation5 + $0x98] sm:$0xff]
        %v1203 = vld [vmem:[#allocation5 + $0xa0] sm:$0xff]
        %v1204 = vld [vmem:[#allocation5 + $0xa8] sm:$0xff]
        %v1205 = vld [vmem:[#allocation5 + $0xb0] sm:$0xff]
        %v1206 = vld [vmem:[#allocation5 + $0xb8] sm:$0xff]
        %v1207 = vld [vmem:[#allocation5 + $0xc0] sm:$0xff]
        %v1208 = vld [vmem:[#allocation5 + $0xc8] sm:$0xff]
        %v1209 = vld [vmem:[#allocation5 + $0xd0] sm:$0xff]
        %v1210 = vld [vmem:[#allocation5 + $0xd8] sm:$0xff]
        %v1211 = vld [vmem:[#allocation5 + $0xe0] sm:$0xff]
        %v1212 = vld [vmem:[#allocation5 + $0xe8] sm:$0xff]
        %v1213 = vld [vmem:[#allocation5 + $0xf0] sm:$0xff]
        %v1214 = vld [vmem:[#allocation5 + $0xf8] sm:$0xff]
        %v1215 = vld [vmem:[#allocation5 + $0x100] sm:$0xff]
        %v1216 = vld [vmem:[#allocation5 + $0x108] sm:$0xff]
        %v1217 = vld [vmem:[#allocation5 + $0x110] sm:$0xff]
        %v1218 = vld [vmem:[#allocation5 + $0x118] sm:$0xff]
        %v1219 = vld [vmem:[#allocation5 + $0x120] sm:$0xff]
        %v1220 = vld [vmem:[#allocation5 + $0x128] sm:$0xff]
        %v1221 = vld [vmem:[#allocation5 + $0x130] sm:$0xff]
        %v1222 = vld [vmem:[#allocation5 + $0x138] sm:$0xff]
        %v1223 = vld [vmem:[#allocation5 + $0x140] sm:$0xff]
        %v1224 = vld [vmem:[#allocation5 + $0x148] sm:$0xff]
        %v1225 = vld [vmem:[#allocation5 + $0x150] sm:$0xff]
        %v1226 = vld [vmem:[#allocation5 + $0x158] sm:$0xff]
        %v1227 = vld [vmem:[#allocation5 + $0x160] sm:$0xff]
        %v1228 = vld [vmem:[#allocation5 + $0x168] sm:$0xff]
        %v1229 = vld [vmem:[#allocation5 + $0x170] sm:$0xff]
        %v1230 = vld [vmem:[#allocation5 + $0x178] sm:$0xff]
        %v1231 = vld [vmem:[#allocation5 + $0x180] sm:$0xff]
        %v1232 = vld [vmem:[#allocation5 + $0x188] sm:$0xff]
        %v1233 = vld [vmem:[#allocation5 + $0x190] sm:$0xff]
        %v1234 = vld [vmem:[#allocation5 + $0x198] sm:$0xff]
        %v1235 = vld [vmem:[#allocation5 + $0x1a0] sm:$0xff]
        %v1236 = vld [vmem:[#allocation5 + $0x1a8] sm:$0xff]
        %v1237 = vld [vmem:[#allocation5 + $0x1b0] sm:$0xff]
        %v1238 = vld [vmem:[#allocation5 + $0x1b8] sm:$0xff]
        %v1239 = vld [vmem:[#allocation5 + $0x1c0] sm:$0xff]
        %v1240 = vld [vmem:[#allocation5 + $0x1c8] sm:$0xff]
        %v1241 = vld [vmem:[#allocation5 + $0x1d0] sm:$0xff]
        %v1242 = vld [vmem:[#allocation5 + $0x1d8] sm:$0xff]
        %v1243 = vld [vmem:[#allocation5 + $0x1e0] sm:$0xff]
        %v1244 = vld [vmem:[#allocation5 + $0x1e8] sm:$0xff]
        %v1245 = vld [vmem:[#allocation5 + $0x1f0] sm:$0xff]
        %v1246 = vld [vmem:[#allocation5 + $0x1f8] sm:$0xff]
        %v1247 = vmax.f32 %v1183, %v1184
        %1248 = vmax.xlane.f32.xlu0 %v1247
        %v1249 = vpop.xlane.xlu0 %1248
        %v1250 = vmax.f32 %v1185, %v1186
        %1251 = vmax.xlane.f32.xlu0 %v1250
        %v1252 = vpop.xlane.xlu0 %1251
        %v1253 = vmax.f32 %v1187, %v1188
        %1254 = vmax.xlane.f32.xlu0 %v1253
        %v1255 = vpop.xlane.xlu0 %1254
        %v1256 = vmax.f32 %v1189, %v1190
        %1257 = vmax.xlane.f32.xlu0 %v1256
        %v1258 = vpop.xlane.xlu0 %1257
        %v1259 = vmax.f32 %v1191, %v1192
        %1260 = vmax.xlane.f32.xlu0 %v1259
        %v1261 = vpop.xlane.xlu0 %1260
        %v1262 = vmax.f32 %v1193, %v1194
        %1263 = vmax.xlane.f32.xlu0 %v1262
        %v1264 = vpop.xlane.xlu0 %1263
        %v1265 = vmax.f32 %v1195, %v1196
        %1266 = vmax.xlane.f32.xlu0 %v1265
        %v1267 = vpop.xlane.xlu0 %1266
        %v1268 = vmax.f32 %v1197, %v1198
        %1269 = vmax.xlane.f32.xlu0 %v1268
        %v1270 = vpop.xlane.xlu0 %1269
        %v1271 = vmax.f32 %v1199, %v1200
        %1272 = vmax.xlane.f32.xlu0 %v1271
        %v1273 = vpop.xlane.xlu0 %1272
        %v1274 = vmax.f32 %v1201, %v1202
        %1275 = vmax.xlane.f32.xlu0 %v1274
        %v1276 = vpop.xlane.xlu0 %1275
        %v1277 = vmax.f32 %v1203, %v1204
        %1278 = vmax.xlane.f32.xlu0 %v1277
        %v1279 = vpop.xlane.xlu0 %1278
        %v1280 = vmax.f32 %v1205, %v1206
        %1281 = vmax.xlane.f32.xlu0 %v1280
        %v1282 = vpop.xlane.xlu0 %1281
        %v1283 = vmax.f32 %v1207, %v1208
        %1284 = vmax.xlane.f32.xlu0 %v1283
        %v1285 = vpop.xlane.xlu0 %1284
        %v1286 = vmax.f32 %v1209, %v1210
        %1287 = vmax.xlane.f32.xlu0 %v1286
        %v1288 = vpop.xlane.xlu0 %1287
        %v1289 = vmax.f32 %v1211, %v1212
        %1290 = vmax.xlane.f32.xlu0 %v1289
        %v1291 = vpop.xlane.xlu0 %1290
        %v1292 = vmax.f32 %v1213, %v1214
        %1293 = vmax.xlane.f32.xlu0 %v1292
        %v1294 = vpop.xlane.xlu0 %1293
        %v1295 = vmax.f32 %v1215, %v1216
        %1296 = vmax.xlane.f32.xlu0 %v1295
        %v1297 = vpop.xlane.xlu0 %1296
        %v1298 = vmax.f32 %v1217, %v1218
        %1299 = vmax.xlane.f32.xlu0 %v1298
        %v1300 = vpop.xlane.xlu0 %1299
        %v1301 = vmax.f32 %v1219, %v1220
        %1302 = vmax.xlane.f32.xlu0 %v1301
        %v1303 = vpop.xlane.xlu0 %1302
        %v1304 = vmax.f32 %v1221, %v1222
        %1305 = vmax.xlane.f32.xlu0 %v1304
        %v1306 = vpop.xlane.xlu0 %1305
        %v1307 = vmax.f32 %v1223, %v1224
        %1308 = vmax.xlane.f32.xlu0 %v1307
        %v1309 = vpop.xlane.xlu0 %1308
        %v1310 = vmax.f32 %v1225, %v1226
        %1311 = vmax.xlane.f32.xlu0 %v1310
        %v1312 = vpop.xlane.xlu0 %1311
        %v1313 = vmax.f32 %v1227, %v1228
        %1314 = vmax.xlane.f32.xlu0 %v1313
        %v1315 = vpop.xlane.xlu0 %1314
        %v1316 = vmax.f32 %v1229, %v1230
        %1317 = vmax.xlane.f32.xlu0 %v1316
        %v1318 = vpop.xlane.xlu0 %1317
        %v1319 = vmax.f32 %v1231, %v1232
        %1320 = vmax.xlane.f32.xlu0 %v1319
        %v1321 = vpop.xlane.xlu0 %1320
        %v1322 = vmax.f32 %v1233, %v1234
        %1323 = vmax.xlane.f32.xlu0 %v1322
        %v1324 = vpop.xlane.xlu0 %1323
        %v1325 = vmax.f32 %v1235, %v1236
        %1326 = vmax.xlane.f32.xlu0 %v1325
        %v1327 = vpop.xlane.xlu0 %1326
        %v1328 = vmax.f32 %v1237, %v1238
        %1329 = vmax.xlane.f32.xlu0 %v1328
        %v1330 = vpop.xlane.xlu0 %1329
        %v1331 = vmax.f32 %v1239, %v1240
        %1332 = vmax.xlane.f32.xlu0 %v1331
        %v1333 = vpop.xlane.xlu0 %1332
        %v1334 = vmax.f32 %v1241, %v1242
        %1335 = vmax.xlane.f32.xlu0 %v1334
        %v1336 = vpop.xlane.xlu0 %1335
        %v1337 = vmax.f32 %v1243, %v1244
        %1338 = vmax.xlane.f32.xlu0 %v1337
        %v1339 = vpop.xlane.xlu0 %1338
        %v1340 = vmax.f32 %v1245, %v1246
        %1341 = vmax.xlane.f32.xlu0 %v1340
        %v1342 = vpop.xlane.xlu0 %1341
        %v1343 = vsub.f32 %v1183, %v1249
        %v1344 = vsub.f32 %v1184, %v1249
        %v1345 = vsub.f32 %v1185, %v1252
        %v1346 = vsub.f32 %v1186, %v1252
        %v1347 = vsub.f32 %v1187, %v1255
        %v1348 = vsub.f32 %v1188, %v1255
        %v1349 = vsub.f32 %v1189, %v1258
        %v1350 = vsub.f32 %v1190, %v1258
        %v1351 = vsub.f32 %v1191, %v1261
        %v1352 = vsub.f32 %v1192, %v1261
        %v1353 = vsub.f32 %v1193, %v1264
        %v1354 = vsub.f32 %v1194, %v1264
        %v1355 = vsub.f32 %v1195, %v1267
        %v1356 = vsub.f32 %v1196, %v1267
        %v1357 = vsub.f32 %v1197, %v1270
        %v1358 = vsub.f32 %v1198, %v1270
        %v1359 = vsub.f32 %v1199, %v1273
        %v1360 = vsub.f32 %v1200, %v1273
        %v1361 = vsub.f32 %v1201, %v1276
        %v1362 = vsub.f32 %v1202, %v1276
        %v1363 = vsub.f32 %v1203, %v1279
        %v1364 = vsub.f32 %v1204, %v1279
        %v1365 = vsub.f32 %v1205, %v1282
        %v1366 = vsub.f32 %v1206, %v1282
        %v1367 = vsub.f32 %v1207, %v1285
        %v1368 = vsub.f32 %v1208, %v1285
        %v1369 = vsub.f32 %v1209, %v1288
        %v1370 = vsub.f32 %v1210, %v1288
        %v1371 = vsub.f32 %v1211, %v1291
        %v1372 = vsub.f32 %v1212, %v1291
        %v1373 = vsub.f32 %v1213, %v1294
        %v1374 = vsub.f32 %v1214, %v1294
        %v1375 = vsub.f32 %v1215, %v1297
        %v1376 = vsub.f32 %v1216, %v1297
        %v1377 = vsub.f32 %v1217, %v1300
        %v1378 = vsub.f32 %v1218, %v1300
        %v1379 = vsub.f32 %v1219, %v1303
        %v1380 = vsub.f32 %v1220, %v1303
        %v1381 = vsub.f32 %v1221, %v1306
        %v1382 = vsub.f32 %v1222, %v1306
        %v1383 = vsub.f32 %v1223, %v1309
        %v1384 = vsub.f32 %v1224, %v1309
        %v1385 = vsub.f32 %v1225, %v1312
        %v1386 = vsub.f32 %v1226, %v1312
        %v1387 = vsub.f32 %v1227, %v1315
        %v1388 = vsub.f32 %v1228, %v1315
        %v1389 = vsub.f32 %v1229, %v1318
        %v1390 = vsub.f32 %v1230, %v1318
        %v1391 = vsub.f32 %v1231, %v1321
        %v1392 = vsub.f32 %v1232, %v1321
        %v1393 = vsub.f32 %v1233, %v1324
        %v1394 = vsub.f32 %v1234, %v1324
        %v1395 = vsub.f32 %v1235, %v1327
        %v1396 = vsub.f32 %v1236, %v1327
        %v1397 = vsub.f32 %v1237, %v1330
        %v1398 = vsub.f32 %v1238, %v1330
        %v1399 = vsub.f32 %v1239, %v1333
        %v1400 = vsub.f32 %v1240, %v1333
        %v1401 = vsub.f32 %v1241, %v1336
        %v1402 = vsub.f32 %v1242, %v1336
        %v1403 = vsub.f32 %v1243, %v1339
        %v1404 = vsub.f32 %v1244, %v1339
        %v1405 = vsub.f32 %v1245, %v1342
        %v1406 = vsub.f32 %v1246, %v1342
        %v1407 = vmul.f32 %v1343, 1.442695
        %v1408 = vpow.pop %v1407
        %v1409 = vmul.f32 %v1344, 1.442695
        %v1410 = vpow.pop %v1409
        %v1411 = vmul.f32 %v1345, 1.442695
        %v1412 = vpow.pop %v1411
        %v1413 = vmul.f32 %v1346, 1.442695
        %v1414 = vpow.pop %v1413
        %v1415 = vmul.f32 %v1347, 1.442695
        %v1416 = vpow.pop %v1415
        %v1417 = vmul.f32 %v1348, 1.442695
        %v1418 = vpow.pop %v1417
        %v1419 = vmul.f32 %v1349, 1.442695
        %v1420 = vpow.pop %v1419
        %v1421 = vmul.f32 %v1350, 1.442695
        %v1422 = vpow.pop %v1421
        %v1423 = vmul.f32 %v1351, 1.442695
        %v1424 = vpow.pop %v1423
        %v1425 = vmul.f32 %v1352, 1.442695
        %v1426 = vpow.pop %v1425
        %v1427 = vmul.f32 %v1353, 1.442695
        %v1428 = vpow.pop %v1427
        %v1429 = vmul.f32 %v1354, 1.442695
        %v1430 = vpow.pop %v1429
        %v1431 = vmul.f32 %v1355, 1.442695
        %v1432 = vpow.pop %v1431
        %v1433 = vmul.f32 %v1356, 1.442695
        %v1434 = vpow.pop %v1433
        %v1435 = vmul.f32 %v1357, 1.442695
        %v1436 = vpow.pop %v1435
        %v1437 = vmul.f32 %v1358, 1.442695
        %v1438 = vpow.pop %v1437
        %v1439 = vmul.f32 %v1359, 1.442695
        %v1440 = vpow.pop %v1439
        %v1441 = vmul.f32 %v1360, 1.442695
        %v1442 = vpow.pop %v1441
        %v1443 = vmul.f32 %v1361, 1.442695
        %v1444 = vpow.pop %v1443
        %v1445 = vmul.f32 %v1362, 1.442695
        %v1446 = vpow.pop %v1445
        %v1447 = vmul.f32 %v1363, 1.442695
        %v1448 = vpow.pop %v1447
        %v1449 = vmul.f32 %v1364, 1.442695
        %v1450 = vpow.pop %v1449
        %v1451 = vmul.f32 %v1365, 1.442695
        %v1452 = vpow.pop %v1451
        %v1453 = vmul.f32 %v1366, 1.442695
        %v1454 = vpow.pop %v1453
        %v1455 = vmul.f32 %v1367, 1.442695
        %v1456 = vpow.pop %v1455
        %v1457 = vmul.f32 %v1368, 1.442695
        %v1458 = vpow.pop %v1457
        %v1459 = vmul.f32 %v1369, 1.442695
        %v1460 = vpow.pop %v1459
        %v1461 = vmul.f32 %v1370, 1.442695
        %v1462 = vpow.pop %v1461
        %v1463 = vmul.f32 %v1371, 1.442695
        %v1464 = vpow.pop %v1463
        %v1465 = vmul.f32 %v1372, 1.442695
        %v1466 = vpow.pop %v1465
        %v1467 = vmul.f32 %v1373, 1.442695
        %v1468 = vpow.pop %v1467
        %v1469 = vmul.f32 %v1374, 1.442695
        %v1470 = vpow.pop %v1469
        %v1471 = vmul.f32 %v1375, 1.442695
        %v1472 = vpow.pop %v1471
        %v1473 = vmul.f32 %v1376, 1.442695
        %v1474 = vpow.pop %v1473
        %v1475 = vmul.f32 %v1377, 1.442695
        %v1476 = vpow.pop %v1475
        %v1477 = vmul.f32 %v1378, 1.442695
        %v1478 = vpow.pop %v1477
        %v1479 = vmul.f32 %v1379, 1.442695
        %v1480 = vpow.pop %v1479
        %v1481 = vmul.f32 %v1380, 1.442695
        %v1482 = vpow.pop %v1481
        %v1483 = vmul.f32 %v1381, 1.442695
        %v1484 = vpow.pop %v1483
        %v1485 = vmul.f32 %v1382, 1.442695
        %v1486 = vpow.pop %v1485
        %v1487 = vmul.f32 %v1383, 1.442695
        %v1488 = vpow.pop %v1487
        %v1489 = vmul.f32 %v1384, 1.442695
        %v1490 = vpow.pop %v1489
        %v1491 = vmul.f32 %v1385, 1.442695
        %v1492 = vpow.pop %v1491
        %v1493 = vmul.f32 %v1386, 1.442695
        %v1494 = vpow.pop %v1493
        %v1495 = vmul.f32 %v1387, 1.442695
        %v1496 = vpow.pop %v1495
        %v1497 = vmul.f32 %v1388, 1.442695
        %v1498 = vpow.pop %v1497
        %v1499 = vmul.f32 %v1389, 1.442695
        %v1500 = vpow.pop %v1499
        %v1501 = vmul.f32 %v1390, 1.442695
        %v1502 = vpow.pop %v1501
        %v1503 = vmul.f32 %v1391, 1.442695
        %v1504 = vpow.pop %v1503
        %v1505 = vmul.f32 %v1392, 1.442695
        %v1506 = vpow.pop %v1505
        %v1507 = vmul.f32 %v1393, 1.442695
        %v1508 = vpow.pop %v1507
        %v1509 = vmul.f32 %v1394, 1.442695
        %v1510 = vpow.pop %v1509
        %v1511 = vmul.f32 %v1395, 1.442695
        %v1512 = vpow.pop %v1511
        %v1513 = vmul.f32 %v1396, 1.442695
        %v1514 = vpow.pop %v1513
        %v1515 = vmul.f32 %v1397, 1.442695
        %v1516 = vpow.pop %v1515
        %v1517 = vmul.f32 %v1398, 1.442695
        %v1518 = vpow.pop %v1517
        %v1519 = vmul.f32 %v1399, 1.442695
        %v1520 = vpow.pop %v1519
        %v1521 = vmul.f32 %v1400, 1.442695
        %v1522 = vpow.pop %v1521
        %v1523 = vmul.f32 %v1401, 1.442695
        %v1524 = vpow.pop %v1523
        %v1525 = vmul.f32 %v1402, 1.442695
        %v1526 = vpow.pop %v1525
        %v1527 = vmul.f32 %v1403, 1.442695
        %v1528 = vpow.pop %v1527
        %v1529 = vmul.f32 %v1404, 1.442695
        %v1530 = vpow.pop %v1529
        %v1531 = vmul.f32 %v1405, 1.442695
        %v1532 = vpow.pop %v1531
        %v1533 = vmul.f32 %v1406, 1.442695
        %v1534 = vpow.pop %v1533
        %1535 = vst [vmem:[#allocation5] sm:$0xff] %v1408
        %1536 = vst [vmem:[#allocation5 + $0x8] sm:$0xff] %v1410
        %1537 = vst [vmem:[#allocation5 + $0x10] sm:$0xff] %v1412
        %1538 = vst [vmem:[#allocation5 + $0x18] sm:$0xff] %v1414
        %1539 = vst [vmem:[#allocation5 + $0x20] sm:$0xff] %v1416
        %1540 = vst [vmem:[#allocation5 + $0x28] sm:$0xff] %v1418
        %1541 = vst [vmem:[#allocation5 + $0x30] sm:$0xff] %v1420
        %1542 = vst [vmem:[#allocation5 + $0x38] sm:$0xff] %v1422
        %1543 = vst [vmem:[#allocation5 + $0x40] sm:$0xff] %v1424
        %1544 = vst [vmem:[#allocation5 + $0x48] sm:$0xff] %v1426
        %1545 = vst [vmem:[#allocation5 + $0x50] sm:$0xff] %v1428
        %1546 = vst [vmem:[#allocation5 + $0x58] sm:$0xff] %v1430
        %1547 = vst [vmem:[#allocation5 + $0x60] sm:$0xff] %v1432
        %1548 = vst [vmem:[#allocation5 + $0x68] sm:$0xff] %v1434
        %1549 = vst [vmem:[#allocation5 + $0x70] sm:$0xff] %v1436
        %1550 = vst [vmem:[#allocation5 + $0x78] sm:$0xff] %v1438
        %1551 = vst [vmem:[#allocation5 + $0x80] sm:$0xff] %v1440
        %1552 = vst [vmem:[#allocation5 + $0x88] sm:$0xff] %v1442
        %1553 = vst [vmem:[#allocation5 + $0x90] sm:$0xff] %v1444
        %1554 = vst [vmem:[#allocation5 + $0x98] sm:$0xff] %v1446
        %1555 = vst [vmem:[#allocation5 + $0xa0] sm:$0xff] %v1448
        %1556 = vst [vmem:[#allocation5 + $0xa8] sm:$0xff] %v1450
        %1557 = vst [vmem:[#allocation5 + $0xb0] sm:$0xff] %v1452
        %1558 = vst [vmem:[#allocation5 + $0xb8] sm:$0xff] %v1454
        %1559 = vst [vmem:[#allocation5 + $0xc0] sm:$0xff] %v1456
        %1560 = vst [vmem:[#allocation5 + $0xc8] sm:$0xff] %v1458
        %1561 = vst [vmem:[#allocation5 + $0xd0] sm:$0xff] %v1460
        %1562 = vst [vmem:[#allocation5 + $0xd8] sm:$0xff] %v1462
        %1563 = vst [vmem:[#allocation5 + $0xe0] sm:$0xff] %v1464
        %1564 = vst [vmem:[#allocation5 + $0xe8] sm:$0xff] %v1466
        %1565 = vst [vmem:[#allocation5 + $0xf0] sm:$0xff] %v1468
        %1566 = vst [vmem:[#allocation5 + $0xf8] sm:$0xff] %v1470
        %1567 = vst [vmem:[#allocation5 + $0x100] sm:$0xff] %v1472
        %1568 = vst [vmem:[#allocation5 + $0x108] sm:$0xff] %v1474
        %1569 = vst [vmem:[#allocation5 + $0x110] sm:$0xff] %v1476
        %1570 = vst [vmem:[#allocation5 + $0x118] sm:$0xff] %v1478
        %1571 = vst [vmem:[#allocation5 + $0x120] sm:$0xff] %v1480
        %1572 = vst [vmem:[#allocation5 + $0x128] sm:$0xff] %v1482
        %1573 = vst [vmem:[#allocation5 + $0x130] sm:$0xff] %v1484
        %1574 = vst [vmem:[#allocation5 + $0x138] sm:$0xff] %v1486
        %1575 = vst [vmem:[#allocation5 + $0x140] sm:$0xff] %v1488
        %1576 = vst [vmem:[#allocation5 + $0x148] sm:$0xff] %v1490
        %1577 = vst [vmem:[#allocation5 + $0x150] sm:$0xff] %v1492
        %1578 = vst [vmem:[#allocation5 + $0x158] sm:$0xff] %v1494
        %1579 = vst [vmem:[#allocation5 + $0x160] sm:$0xff] %v1496
        %1580 = vst [vmem:[#allocation5 + $0x168] sm:$0xff] %v1498
        %1581 = vst [vmem:[#allocation5 + $0x170] sm:$0xff] %v1500
        %1582 = vst [vmem:[#allocation5 + $0x178] sm:$0xff] %v1502
        %1583 = vst [vmem:[#allocation5 + $0x180] sm:$0xff] %v1504
        %1584 = vst [vmem:[#allocation5 + $0x188] sm:$0xff] %v1506
        %1585 = vst [vmem:[#allocation5 + $0x190] sm:$0xff] %v1508
        %1586 = vst [vmem:[#allocation5 + $0x198] sm:$0xff] %v1510
        %1587 = vst [vmem:[#allocation5 + $0x1a0] sm:$0xff] %v1512
        %1588 = vst [vmem:[#allocation5 + $0x1a8] sm:$0xff] %v1514
        %1589 = vst [vmem:[#allocation5 + $0x1b0] sm:$0xff] %v1516
        %1590 = vst [vmem:[#allocation5 + $0x1b8] sm:$0xff] %v1518
        %1591 = vst [vmem:[#allocation5 + $0x1c0] sm:$0xff] %v1520
        %1592 = vst [vmem:[#allocation5 + $0x1c8] sm:$0xff] %v1522
        %1593 = vst [vmem:[#allocation5 + $0x1d0] sm:$0xff] %v1524
        %1594 = vst [vmem:[#allocation5 + $0x1d8] sm:$0xff] %v1526
        %1595 = vst [vmem:[#allocation5 + $0x1e0] sm:$0xff] %v1528
        %1596 = vst [vmem:[#allocation5 + $0x1e8] sm:$0xff] %v1530
        %1597 = vst [vmem:[#allocation5 + $0x1f0] sm:$0xff] %v1532
        %1598 = vst [vmem:[#allocation5 + $0x1f8] sm:$0xff] %v1534
        %v1599 = vld [vmem:[#allocation5] sm:$0xff]
        %v1600 = vld [vmem:[#allocation5 + $0x8] sm:$0xff]
        %v1601 = vld [vmem:[#allocation5 + $0x10] sm:$0xff]
        %v1602 = vld [vmem:[#allocation5 + $0x18] sm:$0xff]
        %v1603 = vld [vmem:[#allocation5 + $0x20] sm:$0xff]
        %v1604 = vld [vmem:[#allocation5 + $0x28] sm:$0xff]
        %v1605 = vld [vmem:[#allocation5 + $0x30] sm:$0xff]
        %v1606 = vld [vmem:[#allocation5 + $0x38] sm:$0xff]
        %v1607 = vld [vmem:[#allocation5 + $0x40] sm:$0xff]
        %v1608 = vld [vmem:[#allocation5 + $0x48] sm:$0xff]
        %v1609 = vld [vmem:[#allocation5 + $0x50] sm:$0xff]
        %v1610 = vld [vmem:[#allocation5 + $0x58] sm:$0xff]
        %v1611 = vld [vmem:[#allocation5 + $0x60] sm:$0xff]
        %v1612 = vld [vmem:[#allocation5 + $0x68] sm:$0xff]
        %v1613 = vld [vmem:[#allocation5 + $0x70] sm:$0xff]
        %v1614 = vld [vmem:[#allocation5 + $0x78] sm:$0xff]
        %v1615 = vld [vmem:[#allocation5 + $0x80] sm:$0xff]
        %v1616 = vld [vmem:[#allocation5 + $0x88] sm:$0xff]
        %v1617 = vld [vmem:[#allocation5 + $0x90] sm:$0xff]
        %v1618 = vld [vmem:[#allocation5 + $0x98] sm:$0xff]
        %v1619 = vld [vmem:[#allocation5 + $0xa0] sm:$0xff]
        %v1620 = vld [vmem:[#allocation5 + $0xa8] sm:$0xff]
        %v1621 = vld [vmem:[#allocation5 + $0xb0] sm:$0xff]
        %v1622 = vld [vmem:[#allocation5 + $0xb8] sm:$0xff]
        %v1623 = vld [vmem:[#allocation5 + $0xc0] sm:$0xff]
        %v1624 = vld [vmem:[#allocation5 + $0xc8] sm:$0xff]
        %v1625 = vld [vmem:[#allocation5 + $0xd0] sm:$0xff]
        %v1626 = vld [vmem:[#allocation5 + $0xd8] sm:$0xff]
        %v1627 = vld [vmem:[#allocation5 + $0xe0] sm:$0xff]
        %v1628 = vld [vmem:[#allocation5 + $0xe8] sm:$0xff]
        %v1629 = vld [vmem:[#allocation5 + $0xf0] sm:$0xff]
        %v1630 = vld [vmem:[#allocation5 + $0xf8] sm:$0xff]
        %v1631 = vld [vmem:[#allocation5 + $0x100] sm:$0xff]
        %v1632 = vld [vmem:[#allocation5 + $0x108] sm:$0xff]
        %v1633 = vld [vmem:[#allocation5 + $0x110] sm:$0xff]
        %v1634 = vld [vmem:[#allocation5 + $0x118] sm:$0xff]
        %v1635 = vld [vmem:[#allocation5 + $0x120] sm:$0xff]
        %v1636 = vld [vmem:[#allocation5 + $0x128] sm:$0xff]
        %v1637 = vld [vmem:[#allocation5 + $0x130] sm:$0xff]
        %v1638 = vld [vmem:[#allocation5 + $0x138] sm:$0xff]
        %v1639 = vld [vmem:[#allocation5 + $0x140] sm:$0xff]
        %v1640 = vld [vmem:[#allocation5 + $0x148] sm:$0xff]
        %v1641 = vld [vmem:[#allocation5 + $0x150] sm:$0xff]
        %v1642 = vld [vmem:[#allocation5 + $0x158] sm:$0xff]
        %v1643 = vld [vmem:[#allocation5 + $0x160] sm:$0xff]
        %v1644 = vld [vmem:[#allocation5 + $0x168] sm:$0xff]
        %v1645 = vld [vmem:[#allocation5 + $0x170] sm:$0xff]
        %v1646 = vld [vmem:[#allocation5 + $0x178] sm:$0xff]
        %v1647 = vld [vmem:[#allocation5 + $0x180] sm:$0xff]
        %v1648 = vld [vmem:[#allocation5 + $0x188] sm:$0xff]
        %v1649 = vld [vmem:[#allocation5 + $0x190] sm:$0xff]
        %v1650 = vld [vmem:[#allocation5 + $0x198] sm:$0xff]
        %v1651 = vld [vmem:[#allocation5 + $0x1a0] sm:$0xff]
        %v1652 = vld [vmem:[#allocation5 + $0x1a8] sm:$0xff]
        %v1653 = vld [vmem:[#allocation5 + $0x1b0] sm:$0xff]
        %v1654 = vld [vmem:[#allocation5 + $0x1b8] sm:$0xff]
        %v1655 = vld [vmem:[#allocation5 + $0x1c0] sm:$0xff]
        %v1656 = vld [vmem:[#allocation5 + $0x1c8] sm:$0xff]
        %v1657 = vld [vmem:[#allocation5 + $0x1d0] sm:$0xff]
        %v1658 = vld [vmem:[#allocation5 + $0x1d8] sm:$0xff]
        %v1659 = vld [vmem:[#allocation5 + $0x1e0] sm:$0xff]
        %v1660 = vld [vmem:[#allocation5 + $0x1e8] sm:$0xff]
        %v1661 = vld [vmem:[#allocation5 + $0x1f0] sm:$0xff]
        %v1662 = vld [vmem:[#allocation5 + $0x1f8] sm:$0xff]
        %v1663 = vadd.f32 %v1599, %v1600
        %1664 = vadd.xlane.f32.xlu0 %v1663
        %v1665 = vpop.xlane.xlu0 %1664
        %v1666 = vadd.f32 %v1601, %v1602
        %1667 = vadd.xlane.f32.xlu0 %v1666
        %v1668 = vpop.xlane.xlu0 %1667
        %v1669 = vadd.f32 %v1603, %v1604
        %1670 = vadd.xlane.f32.xlu0 %v1669
        %v1671 = vpop.xlane.xlu0 %1670
        %v1672 = vadd.f32 %v1605, %v1606
        %1673 = vadd.xlane.f32.xlu0 %v1672
        %v1674 = vpop.xlane.xlu0 %1673
        %v1675 = vadd.f32 %v1607, %v1608
        %1676 = vadd.xlane.f32.xlu0 %v1675
        %v1677 = vpop.xlane.xlu0 %1676
        %v1678 = vadd.f32 %v1609, %v1610
        %1679 = vadd.xlane.f32.xlu0 %v1678
        %v1680 = vpop.xlane.xlu0 %1679
        %v1681 = vadd.f32 %v1611, %v1612
        %1682 = vadd.xlane.f32.xlu0 %v1681
        %v1683 = vpop.xlane.xlu0 %1682
        %v1684 = vadd.f32 %v1613, %v1614
        %1685 = vadd.xlane.f32.xlu0 %v1684
        %v1686 = vpop.xlane.xlu0 %1685
        %v1687 = vadd.f32 %v1615, %v1616
        %1688 = vadd.xlane.f32.xlu0 %v1687
        %v1689 = vpop.xlane.xlu0 %1688
        %v1690 = vadd.f32 %v1617, %v1618
        %1691 = vadd.xlane.f32.xlu0 %v1690
        %v1692 = vpop.xlane.xlu0 %1691
        %v1693 = vadd.f32 %v1619, %v1620
        %1694 = vadd.xlane.f32.xlu0 %v1693
        %v1695 = vpop.xlane.xlu0 %1694
        %v1696 = vadd.f32 %v1621, %v1622
        %1697 = vadd.xlane.f32.xlu0 %v1696
        %v1698 = vpop.xlane.xlu0 %1697
        %v1699 = vadd.f32 %v1623, %v1624
        %1700 = vadd.xlane.f32.xlu0 %v1699
        %v1701 = vpop.xlane.xlu0 %1700
        %v1702 = vadd.f32 %v1625, %v1626
        %1703 = vadd.xlane.f32.xlu0 %v1702
        %v1704 = vpop.xlane.xlu0 %1703
        %v1705 = vadd.f32 %v1627, %v1628
        %1706 = vadd.xlane.f32.xlu0 %v1705
        %v1707 = vpop.xlane.xlu0 %1706
        %v1708 = vadd.f32 %v1629, %v1630
        %1709 = vadd.xlane.f32.xlu0 %v1708
        %v1710 = vpop.xlane.xlu0 %1709
        %v1711 = vadd.f32 %v1631, %v1632
        %1712 = vadd.xlane.f32.xlu0 %v1711
        %v1713 = vpop.xlane.xlu0 %1712
        %v1714 = vadd.f32 %v1633, %v1634
        %1715 = vadd.xlane.f32.xlu0 %v1714
        %v1716 = vpop.xlane.xlu0 %1715
        %v1717 = vadd.f32 %v1635, %v1636
        %1718 = vadd.xlane.f32.xlu0 %v1717
        %v1719 = vpop.xlane.xlu0 %1718
        %v1720 = vadd.f32 %v1637, %v1638
        %1721 = vadd.xlane.f32.xlu0 %v1720
        %v1722 = vpop.xlane.xlu0 %1721
        %v1723 = vadd.f32 %v1639, %v1640
        %1724 = vadd.xlane.f32.xlu0 %v1723
        %v1725 = vpop.xlane.xlu0 %1724
        %v1726 = vadd.f32 %v1641, %v1642
        %1727 = vadd.xlane.f32.xlu0 %v1726
        %v1728 = vpop.xlane.xlu0 %1727
        %v1729 = vadd.f32 %v1643, %v1644
        %1730 = vadd.xlane.f32.xlu0 %v1729
        %v1731 = vpop.xlane.xlu0 %1730
        %v1732 = vadd.f32 %v1645, %v1646
        %1733 = vadd.xlane.f32.xlu0 %v1732
        %v1734 = vpop.xlane.xlu0 %1733
        %v1735 = vadd.f32 %v1647, %v1648
        %1736 = vadd.xlane.f32.xlu0 %v1735
        %v1737 = vpop.xlane.xlu0 %1736
        %v1738 = vadd.f32 %v1649, %v1650
        %1739 = vadd.xlane.f32.xlu0 %v1738
        %v1740 = vpop.xlane.xlu0 %1739
        %v1741 = vadd.f32 %v1651, %v1652
        %1742 = vadd.xlane.f32.xlu0 %v1741
        %v1743 = vpop.xlane.xlu0 %1742
        %v1744 = vadd.f32 %v1653, %v1654
        %1745 = vadd.xlane.f32.xlu0 %v1744
        %v1746 = vpop.xlane.xlu0 %1745
        %v1747 = vadd.f32 %v1655, %v1656
        %1748 = vadd.xlane.f32.xlu0 %v1747
        %v1749 = vpop.xlane.xlu0 %1748
        %v1750 = vadd.f32 %v1657, %v1658
        %1751 = vadd.xlane.f32.xlu0 %v1750
        %v1752 = vpop.xlane.xlu0 %1751
        %v1753 = vadd.f32 %v1659, %v1660
        %1754 = vadd.xlane.f32.xlu0 %v1753
        %v1755 = vpop.xlane.xlu0 %1754
        %v1756 = vadd.f32 %v1661, %v1662
        %1757 = vadd.xlane.f32.xlu0 %v1756
        %v1758 = vpop.xlane.xlu0 %1757
        %v1759 = vrcp.pop %v1665
        %v1760 = vrcp.pop %v1668
        %v1761 = vrcp.pop %v1671
        %v1762 = vrcp.pop %v1674
        %v1763 = vrcp.pop %v1677
        %v1764 = vrcp.pop %v1680
        %v1765 = vrcp.pop %v1683
        %v1766 = vrcp.pop %v1686
        %v1767 = vrcp.pop %v1689
        %v1768 = vrcp.pop %v1692
        %v1769 = vrcp.pop %v1695
        %v1770 = vrcp.pop %v1698
        %v1771 = vrcp.pop %v1701
        %v1772 = vrcp.pop %v1704
        %v1773 = vrcp.pop %v1707
        %v1774 = vrcp.pop %v1710
        %v1775 = vrcp.pop %v1713
        %v1776 = vrcp.pop %v1716
        %v1777 = vrcp.pop %v1719
        %v1778 = vrcp.pop %v1722
        %v1779 = vrcp.pop %v1725
        %v1780 = vrcp.pop %v1728
        %v1781 = vrcp.pop %v1731
        %v1782 = vrcp.pop %v1734
        %v1783 = vrcp.pop %v1737
        %v1784 = vrcp.pop %v1740
        %v1785 = vrcp.pop %v1743
        %v1786 = vrcp.pop %v1746
        %v1787 = vrcp.pop %v1749
        %v1788 = vrcp.pop %v1752
        %v1789 = vrcp.pop %v1755
        %v1790 = vrcp.pop %v1758
        %v1791 = vmul.f32 %v1599, %v1759
        %v1792 = vmul.f32 %v1600, %v1759
        %v1793 = vmul.f32 %v1601, %v1760
        %v1794 = vmul.f32 %v1602, %v1760
        %v1795 = vmul.f32 %v1603, %v1761
        %v1796 = vmul.f32 %v1604, %v1761
        %v1797 = vmul.f32 %v1605, %v1762
        %v1798 = vmul.f32 %v1606, %v1762
        %v1799 = vmul.f32 %v1607, %v1763
        %v1800 = vmul.f32 %v1608, %v1763
        %v1801 = vmul.f32 %v1609, %v1764
        %v1802 = vmul.f32 %v1610, %v1764
        %v1803 = vmul.f32 %v1611, %v1765
        %v1804 = vmul.f32 %v1612, %v1765
        %v1805 = vmul.f32 %v1613, %v1766
        %v1806 = vmul.f32 %v1614, %v1766
        %v1807 = vmul.f32 %v1615, %v1767
        %v1808 = vmul.f32 %v1616, %v1767
        %v1809 = vmul.f32 %v1617, %v1768
        %v1810 = vmul.f32 %v1618, %v1768
        %v1811 = vmul.f32 %v1619, %v1769
        %v1812 = vmul.f32 %v1620, %v1769
        %v1813 = vmul.f32 %v1621, %v1770
        %v1814 = vmul.f32 %v1622, %v1770
        %v1815 = vmul.f32 %v1623, %v1771
        %v1816 = vmul.f32 %v1624, %v1771
        %v1817 = vmul.f32 %v1625, %v1772
        %v1818 = vmul.f32 %v1626, %v1772
        %v1819 = vmul.f32 %v1627, %v1773
        %v1820 = vmul.f32 %v1628, %v1773
        %v1821 = vmul.f32 %v1629, %v1774
        %v1822 = vmul.f32 %v1630, %v1774
        %v1823 = vmul.f32 %v1631, %v1775
        %v1824 = vmul.f32 %v1632, %v1775
        %v1825 = vmul.f32 %v1633, %v1776
        %v1826 = vmul.f32 %v1634, %v1776
        %v1827 = vmul.f32 %v1635, %v1777
        %v1828 = vmul.f32 %v1636, %v1777
        %v1829 = vmul.f32 %v1637, %v1778
        %v1830 = vmul.f32 %v1638, %v1778
        %v1831 = vmul.f32 %v1639, %v1779
        %v1832 = vmul.f32 %v1640, %v1779
        %v1833 = vmul.f32 %v1641, %v1780
        %v1834 = vmul.f32 %v1642, %v1780
        %v1835 = vmul.f32 %v1643, %v1781
        %v1836 = vmul.f32 %v1644, %v1781
        %v1837 = vmul.f32 %v1645, %v1782
        %v1838 = vmul.f32 %v1646, %v1782
        %v1839 = vmul.f32 %v1647, %v1783
        %v1840 = vmul.f32 %v1648, %v1783
        %v1841 = vmul.f32 %v1649, %v1784
        %v1842 = vmul.f32 %v1650, %v1784
        %v1843 = vmul.f32 %v1651, %v1785
        %v1844 = vmul.f32 %v1652, %v1785
        %v1845 = vmul.f32 %v1653, %v1786
        %v1846 = vmul.f32 %v1654, %v1786
        %v1847 = vmul.f32 %v1655, %v1787
        %v1848 = vmul.f32 %v1656, %v1787
        %v1849 = vmul.f32 %v1657, %v1788
        %v1850 = vmul.f32 %v1658, %v1788
        %v1851 = vmul.f32 %v1659, %v1789
        %v1852 = vmul.f32 %v1660, %v1789
        %v1853 = vmul.f32 %v1661, %v1790
        %v1854 = vmul.f32 %v1662, %v1790
        %1855 = vst [vmem:[#allocation5] sm:$0xff] %v1791
        %1856 = vst [vmem:[#allocation5 + $0x8] sm:$0xff] %v1792
        %1857 = vst [vmem:[#allocation5 + $0x10] sm:$0xff] %v1793
        %1858 = vst [vmem:[#allocation5 + $0x18] sm:$0xff] %v1794
        %1859 = vst [vmem:[#allocation5 + $0x20] sm:$0xff] %v1795
        %1860 = vst [vmem:[#allocation5 + $0x28] sm:$0xff] %v1796
        %1861 = vst [vmem:[#allocation5 + $0x30] sm:$0xff] %v1797
        %1862 = vst [vmem:[#allocation5 + $0x38] sm:$0xff] %v1798
        %1863 = vst [vmem:[#allocation5 + $0x40] sm:$0xff] %v1799
        %1864 = vst [vmem:[#allocation5 + $0x48] sm:$0xff] %v1800
        %1865 = vst [vmem:[#allocation5 + $0x50] sm:$0xff] %v1801
        %1866 = vst [vmem:[#allocation5 + $0x58] sm:$0xff] %v1802
        %1867 = vst [vmem:[#allocation5 + $0x60] sm:$0xff] %v1803
        %1868 = vst [vmem:[#allocation5 + $0x68] sm:$0xff] %v1804
        %1869 = vst [vmem:[#allocation5 + $0x70] sm:$0xff] %v1805
        %1870 = vst [vmem:[#allocation5 + $0x78] sm:$0xff] %v1806
        %1871 = vst [vmem:[#allocation5 + $0x80] sm:$0xff] %v1807
        %1872 = vst [vmem:[#allocation5 + $0x88] sm:$0xff] %v1808
        %1873 = vst [vmem:[#allocation5 + $0x90] sm:$0xff] %v1809
        %1874 = vst [vmem:[#allocation5 + $0x98] sm:$0xff] %v1810
        %1875 = vst [vmem:[#allocation5 + $0xa0] sm:$0xff] %v1811
        %1876 = vst [vmem:[#allocation5 + $0xa8] sm:$0xff] %v1812
        %1877 = vst [vmem:[#allocation5 + $0xb0] sm:$0xff] %v1813
        %1878 = vst [vmem:[#allocation5 + $0xb8] sm:$0xff] %v1814
        %1879 = vst [vmem:[#allocation5 + $0xc0] sm:$0xff] %v1815
        %1880 = vst [vmem:[#allocation5 + $0xc8] sm:$0xff] %v1816
        %1881 = vst [vmem:[#allocation5 + $0xd0] sm:$0xff] %v1817
        %1882 = vst [vmem:[#allocation5 + $0xd8] sm:$0xff] %v1818
        %1883 = vst [vmem:[#allocation5 + $0xe0] sm:$0xff] %v1819
        %1884 = vst [vmem:[#allocation5 + $0xe8] sm:$0xff] %v1820
        %1885 = vst [vmem:[#allocation5 + $0xf0] sm:$0xff] %v1821
        %1886 = vst [vmem:[#allocation5 + $0xf8] sm:$0xff] %v1822
        %1887 = vst [vmem:[#allocation5 + $0x100] sm:$0xff] %v1823
        %1888 = vst [vmem:[#allocation5 + $0x108] sm:$0xff] %v1824
        %1889 = vst [vmem:[#allocation5 + $0x110] sm:$0xff] %v1825
        %1890 = vst [vmem:[#allocation5 + $0x118] sm:$0xff] %v1826
        %1891 = vst [vmem:[#allocation5 + $0x120] sm:$0xff] %v1827
        %1892 = vst [vmem:[#allocation5 + $0x128] sm:$0xff] %v1828
        %1893 = vst [vmem:[#allocation5 + $0x130] sm:$0xff] %v1829
        %1894 = vst [vmem:[#allocation5 + $0x138] sm:$0xff] %v1830
        %1895 = vst [vmem:[#allocation5 + $0x140] sm:$0xff] %v1831
        %1896 = vst [vmem:[#allocation5 + $0x148] sm:$0xff] %v1832
        %1897 = vst [vmem:[#allocation5 + $0x150] sm:$0xff] %v1833
        %1898 = vst [vmem:[#allocation5 + $0x158] sm:$0xff] %v1834
        %1899 = vst [vmem:[#allocation5 + $0x160] sm:$0xff] %v1835
        %1900 = vst [vmem:[#allocation5 + $0x168] sm:$0xff] %v1836
        %1901 = vst [vmem:[#allocation5 + $0x170] sm:$0xff] %v1837
        %1902 = vst [vmem:[#allocation5 + $0x178] sm:$0xff] %v1838
        %1903 = vst [vmem:[#allocation5 + $0x180] sm:$0xff] %v1839
        %1904 = vst [vmem:[#allocation5 + $0x188] sm:$0xff] %v1840
        %1905 = vst [vmem:[#allocation5 + $0x190] sm:$0xff] %v1841
        %1906 = vst [vmem:[#allocation5 + $0x198] sm:$0xff] %v1842
        %1907 = vst [vmem:[#allocation5 + $0x1a0] sm:$0xff] %v1843
        %1908 = vst [vmem:[#allocation5 + $0x1a8] sm:$0xff] %v1844
        %1909 = vst [vmem:[#allocation5 + $0x1b0] sm:$0xff] %v1845
        %1910 = vst [vmem:[#allocation5 + $0x1b8] sm:$0xff] %v1846
        %1911 = vst [vmem:[#allocation5 + $0x1c0] sm:$0xff] %v1847
        %1912 = vst [vmem:[#allocation5 + $0x1c8] sm:$0xff] %v1848
        %1913 = vst [vmem:[#allocation5 + $0x1d0] sm:$0xff] %v1849
        %1914 = vst [vmem:[#allocation5 + $0x1d8] sm:$0xff] %v1850
        %1915 = vst [vmem:[#allocation5 + $0x1e0] sm:$0xff] %v1851
        %1916 = vst [vmem:[#allocation5 + $0x1e8] sm:$0xff] %v1852
        %1917 = vst [vmem:[#allocation5 + $0x1f0] sm:$0xff] %v1853
        %1918 = vst [vmem:[#allocation5 + $0x1f8] sm:$0xff] %v1854
        %v1919 = vld [vmem:[#allocation4] sm:$0xff]
        %v1920 = vld [vmem:[#allocation4 + $0x8] sm:$0xff]
        %v1921 = vld [vmem:[#allocation5] sm:$0xff]
        %v1922 = vld [vmem:[#allocation5 + $0x8] sm:$0xff]
        %v1923 = vld [vmem:[#allocation5 + $0x10] sm:$0xff]
        %v1924 = vld [vmem:[#allocation5 + $0x18] sm:$0xff]
        %v1925 = vld [vmem:[#allocation5 + $0x20] sm:$0xff]
        %v1926 = vld [vmem:[#allocation5 + $0x28] sm:$0xff]
        %v1927 = vld [vmem:[#allocation5 + $0x30] sm:$0xff]
        %v1928 = vld [vmem:[#allocation5 + $0x38] sm:$0xff]
        %v1929 = vld [vmem:[#allocation5 + $0x40] sm:$0xff]
        %v1930 = vld [vmem:[#allocation5 + $0x48] sm:$0xff]
        %v1931 = vld [vmem:[#allocation5 + $0x50] sm:$0xff]
        %v1932 = vld [vmem:[#allocation5 + $0x58] sm:$0xff]
        %v1933 = vld [vmem:[#allocation5 + $0x60] sm:$0xff]
        %v1934 = vld [vmem:[#allocation5 + $0x68] sm:$0xff]
        %v1935 = vld [vmem:[#allocation5 + $0x70] sm:$0xff]
        %v1936 = vld [vmem:[#allocation5 + $0x78] sm:$0xff]
        %v1937 = vld [vmem:[#allocation5 + $0x80] sm:$0xff]
        %v1938 = vld [vmem:[#allocation5 + $0x88] sm:$0xff]
        %v1939 = vld [vmem:[#allocation5 + $0x90] sm:$0xff]
        %v1940 = vld [vmem:[#allocation5 + $0x98] sm:$0xff]
        %v1941 = vld [vmem:[#allocation5 + $0xa0] sm:$0xff]
        %v1942 = vld [vmem:[#allocation5 + $0xa8] sm:$0xff]
        %v1943 = vld [vmem:[#allocation5 + $0xb0] sm:$0xff]
        %v1944 = vld [vmem:[#allocation5 + $0xb8] sm:$0xff]
        %v1945 = vld [vmem:[#allocation5 + $0xc0] sm:$0xff]
        %v1946 = vld [vmem:[#allocation5 + $0xc8] sm:$0xff]
        %v1947 = vld [vmem:[#allocation5 + $0xd0] sm:$0xff]
        %v1948 = vld [vmem:[#allocation5 + $0xd8] sm:$0xff]
        %v1949 = vld [vmem:[#allocation5 + $0xe0] sm:$0xff]
        %v1950 = vld [vmem:[#allocation5 + $0xe8] sm:$0xff]
        %v1951 = vld [vmem:[#allocation5 + $0xf0] sm:$0xff]
        %v1952 = vld [vmem:[#allocation5 + $0xf8] sm:$0xff]
        %v1953 = vld [vmem:[#allocation5 + $0x100] sm:$0xff]
        %v1954 = vld [vmem:[#allocation5 + $0x108] sm:$0xff]
        %v1955 = vld [vmem:[#allocation5 + $0x110] sm:$0xff]
        %v1956 = vld [vmem:[#allocation5 + $0x118] sm:$0xff]
        %v1957 = vld [vmem:[#allocation5 + $0x120] sm:$0xff]
        %v1958 = vld [vmem:[#allocation5 + $0x128] sm:$0xff]
        %v1959 = vld [vmem:[#allocation5 + $0x130] sm:$0xff]
        %v1960 = vld [vmem:[#allocation5 + $0x138] sm:$0xff]
        %v1961 = vld [vmem:[#allocation5 + $0x140] sm:$0xff]
        %v1962 = vld [vmem:[#allocation5 + $0x148] sm:$0xff]
        %v1963 = vld [vmem:[#allocation5 + $0x150] sm:$0xff]
        %v1964 = vld [vmem:[#allocation5 + $0x158] sm:$0xff]
        %v1965 = vld [vmem:[#allocation5 + $0x160] sm:$0xff]
        %v1966 = vld [vmem:[#allocation5 + $0x168] sm:$0xff]
        %v1967 = vld [vmem:[#allocation5 + $0x170] sm:$0xff]
        %v1968 = vld [vmem:[#allocation5 + $0x178] sm:$0xff]
        %v1969 = vld [vmem:[#allocation5 + $0x180] sm:$0xff]
        %v1970 = vld [vmem:[#allocation5 + $0x188] sm:$0xff]
        %v1971 = vld [vmem:[#allocation5 + $0x190] sm:$0xff]
        %v1972 = vld [vmem:[#allocation5 + $0x198] sm:$0xff]
        %v1973 = vld [vmem:[#allocation5 + $0x1a0] sm:$0xff]
        %v1974 = vld [vmem:[#allocation5 + $0x1a8] sm:$0xff]
        %v1975 = vld [vmem:[#allocation5 + $0x1b0] sm:$0xff]
        %v1976 = vld [vmem:[#allocation5 + $0x1b8] sm:$0xff]
        %v1977 = vld [vmem:[#allocation5 + $0x1c0] sm:$0xff]
        %v1978 = vld [vmem:[#allocation5 + $0x1c8] sm:$0xff]
        %v1979 = vld [vmem:[#allocation5 + $0x1d0] sm:$0xff]
        %v1980 = vld [vmem:[#allocation5 + $0x1d8] sm:$0xff]
        %v1981 = vld [vmem:[#allocation5 + $0x1e0] sm:$0xff]
        %v1982 = vld [vmem:[#allocation5 + $0x1e8] sm:$0xff]
        %v1983 = vld [vmem:[#allocation5 + $0x1f0] sm:$0xff]
        %v1984 = vld [vmem:[#allocation5 + $0x1f8] sm:$0xff]
        %1985 = vmatprep.subr.mxu0 %v1952
        %1986 = vmatpush1.xpose.msra.mxu0 %v1951
        %1987 = vmatprep.subr.mxu0 %v1950
        %1988 = vmatpush1.xpose.msra.mxu0 %v1949
        %1989 = vmatprep.subr.mxu0 %v1948
        %1990 = vmatpush1.xpose.msra.mxu0 %v1947
        %1991 = vmatprep.subr.mxu0 %v1946
        %1992 = vmatpush1.xpose.msra.mxu0 %v1945
        %1993 = vmatprep.subr.mxu0 %v1944
        %1994 = vmatpush1.xpose.msra.mxu0 %v1943
        %1995 = vmatprep.subr.mxu0 %v1942
        %1996 = vmatpush1.xpose.msra.mxu0 %v1941
        %1997 = vmatprep.subr.mxu0 %v1940
        %1998 = vmatpush1.xpose.msra.mxu0 %v1939
        %1999 = vmatprep.subr.mxu0 %v1938
        %2000 = vmatpush1.xpose.msra.mxu0 %v1937
        %2001 = vmatprep.subr.mxu0 %v1936
        %2002 = vmatpush1.xpose.msra.mxu0 %v1935
        %2003 = vmatprep.subr.mxu0 %v1934
        %2004 = vmatpush1.xpose.msra.mxu0 %v1933
        %2005 = vmatprep.subr.mxu0 %v1932
        %2006 = vmatpush1.xpose.msra.mxu0 %v1931
        %2007 = vmatprep.subr.mxu0 %v1930
        %2008 = vmatpush1.xpose.msra.mxu0 %v1929
        %2009 = vmatprep.subr.mxu0 %v1928
        %2010 = vmatpush1.xpose.msra.mxu0 %v1927
        %2011 = vmatprep.subr.mxu0 %v1926
        %2012 = vmatpush1.xpose.msra.mxu0 %v1925
        %2013 = vmatprep.subr.mxu0 %v1924
        %2014 = vmatpush1.xpose.msra.mxu0 %v1923
        %2015 = vmatprep.subr.mxu0 %v1922
        %2016 = vmatpush1.xpose.msra.mxu0 %v1921
        %2017 = vmatprep.subr.mxu0 %v1984
        %2018 = vmatpush2.xpose.msra.mxu0 %v1983
        %2019 = vmatprep.subr.mxu0 %v1982
        %2020 = vmatpush2.xpose.msra.mxu0 %v1981
        %2021 = vmatprep.subr.mxu0 %v1980
        %2022 = vmatpush2.xpose.msra.mxu0 %v1979
        %2023 = vmatprep.subr.mxu0 %v1978
        %2024 = vmatpush2.xpose.msra.mxu0 %v1977
        %2025 = vmatprep.subr.mxu0 %v1976
        %2026 = vmatpush2.xpose.msra.mxu0 %v1975
        %2027 = vmatprep.subr.mxu0 %v1974
        %2028 = vmatpush2.xpose.msra.mxu0 %v1973
        %2029 = vmatprep.subr.mxu0 %v1972
        %2030 = vmatpush2.xpose.msra.mxu0 %v1971
        %2031 = vmatprep.subr.mxu0 %v1970
        %2032 = vmatpush2.xpose.msra.mxu0 %v1969
        %2033 = vmatprep.subr.mxu0 %v1968
        %2034 = vmatpush2.xpose.msra.mxu0 %v1967
        %2035 = vmatprep.subr.mxu0 %v1966
        %2036 = vmatpush2.xpose.msra.mxu0 %v1965
        %2037 = vmatprep.subr.mxu0 %v1964
        %2038 = vmatpush2.xpose.msra.mxu0 %v1963
        %2039 = vmatprep.subr.mxu0 %v1962
        %2040 = vmatpush2.xpose.msra.mxu0 %v1961
        %2041 = vmatprep.subr.mxu0 %v1960
        %2042 = vmatpush2.xpose.msra.mxu0 %v1959
        %2043 = vmatprep.subr.mxu0 %v1958
        %2044 = vmatpush2.xpose.msra.mxu0 %v1957
        %2045 = vmatprep.subr.mxu0 %v1956
        %2046 = vmatpush2.xpose.msra.mxu0 %v1955
        %2047 = vmatprep.subr.mxu0 %v1954
        %2048 = vmatpush2.xpose.msra.mxu0 %v1953
        %2049 = vmatprep.mubr.f32.mxu0 %v1920
        %2050 = vmatmul.mubr.f32.gmra.mxu0 %v1919
        %v2051 = vpop.f32.mrf.mxu0
        %v2052 = vadd.f32 0.0, %v2051
        %v2053 = vpop.f32.mrf.mxu0
        %v2054 = vadd.f32 0.0, %v2053
        %2055 = vdwg.mxu0
        %s2056 = sld [smem:[#allocation7]]
        %v2057 = vstv %s2056
        %v2058 = vmul.f32 %v2057, %v2052
        %v2059 = vmul.f32 %v2057, %v2054
        %s2060 = sshra.s32 %s849, 7
        %s2061 = sand.u32 %s849, 127
        %s2062 = smul.addr %s2060, 8
        %s2063 = scalar_lea.vmem %s308, %s2062
        %v2064 = vld [vmem:[%s2063] sm:$0xff]
        %v2065 = vld [vmem:[%s2063 + $0x8] sm:$0xff]
        %v2066 = vadd.f32 %v2058, %v2064
        %v2067 = vadd.f32 %v2059, %v2065
        %2068 = vst [vmem:[%s303] sm:$0xff] %v2066
        %2069 = vst [vmem:[%s303 + $0x8] sm:$0xff] %v2067
        %s2070 = sand.u32 %s203, 1
        %s2071 = scalar_lea.sflag [#allocation9], %s2070
        %s2072 = sand.u32 %s203, 1
        %s2073 = smul.addr %s2072, 16
        %s2074 = scalar_lea.vmem [#allocation8], %s2073
        // Predicated region
        $region53: #{tpu_custom_call.1} parent=47 // pred_check
          %p2075 = pneg %p213
        $region54: #{tpu_custom_call.1} parent=47 // pred_check_branch
          %2077 = sbr.rel (%p2075) target = $region56
        $region55: #{tpu_custom_call.1} parent=47 // pred_region
          %s2078 = smul.u32 2, %s29
          %s2080 = ssub.s32 256, 256
          %2081 = vsyncadd %s2071, %s2080
          %s2082 = smul.addr %s28, 2
          %s2083 = sadd.s32 %s2078, %s2082
          %s2084 = smul.addr %s2083, 128
          %s2085 = scalar_lea.hbm %s7, %s2084
          %s2087 = sshll.u32 %s2074, 4
          %s2088 = int_to_ptr.vmem [resolvable:$true] %s2087
          %2090 = dma.vmem_to_hbm [thread:$0]  %s2088, 256, %s2085, %s2071
        $region56: #{tpu_custom_call.1} parent=47 // pred_fallthru
          _
      $region48: #{tpu_custom_call.1} parent=5 // pred_fallthru
        _
      %p2091 = scmp.le.s32.totalorder 2, %s19
      // Predicated region
      $region57: #{tpu_custom_call.1} parent=5 // pred_check
        %p2092 = pneg %p2091
      $region58: #{tpu_custom_call.1} parent=5 // pred_check_branch
        %2094 = sbr.rel (%p2092) target = $region60
      $region59: #{tpu_custom_call.1} parent=5 // pred_region
        %s2095 = ssub.s32 %s19, 2
        // Predicated region
        $region61: #{tpu_custom_call.1} parent=59 // pred_check
          %p2096 = pneg %p219
        $region62: #{tpu_custom_call.1} parent=59 // pred_check_branch
          %2098 = sbr.rel (%p2096) target = $region64
        $region63: #{tpu_custom_call.1} parent=59 // pred_region
          %s2099 = sand.u32 %s204, 1
          %s2100 = scalar_lea.sflag [#allocation9], %s2099
          %s2101 = sand.u32 %s204, 1
          %s2102 = smul.addr %s2101, 16
          %s2103 = scalar_lea.vmem [#allocation8], %s2102
          %2104 = dma.done %s2100, 256
        $region64: #{tpu_custom_call.1} parent=59 // pred_fallthru
          _
      $region60: #{tpu_custom_call.1} parent=5 // pred_fallthru
        _
    $region6: #{tpu_custom_call.1} parent=1 // loop_footer
      %s23 = sadd.s32 1, %s19
    $region7: #{tpu_custom_call.1} parent=1 // loop_footer_branch
      %18 = sbr.rel target = $region3
    $region8: #{tpu_custom_call.1} parent=1 // loop_exit
      _
    %2105 = vsyncpa [#allocation9], 1
    %s2106 = scalar_lea.sflag [#allocation9], 1
    %2107 = vsyncpa %s2106, 1

</llo_original>
